<compile_context>
chip_gen: v5e
topology: v5e:2x2
jax: 0.10.0
libtpu: 0.0.40
codegen_flags: <defaults>
</compile_context>

<pallas_src>
import functools
import math

import numpy as np
import jax
import jax.numpy as jnp
from jax.experimental import pallas as pl
from jax.experimental.pallas import tpu as pltpu


# ---------------------------------------------------------------------------
# Fused attention-logits Pallas kernel
#   (TimeEncode + a-vector contraction + pair term + LeakyReLU + adj mask)
# ---------------------------------------------------------------------------
def _gat_logits_kernel(const_ref, ts_ref, adj_ref, pi_ref, pj_ref, out_ref, *,
                       expand_dim, alpha):
    # const_ref: SMEM (3, E)  rows = [basis_freq, amplitude, phase-offset]
    # ts_ref:    VMEM (TR, C) raw timestamps (lane-dense rows)
    # adj_ref:   VMEM (TR, C) adjacency rows
    # pi_ref:    VMEM (TR, 1) per-row pair term  z[i] . a[:F]
    # pj_ref:    VMEM (1,  C) per-col pair term  z[j] . a[F:]  (grid-resident)
    # out_ref:   VMEM (TR, C) masked pre-softmax logits
    t = ts_ref[...]
    acc = pi_ref[...] + pj_ref[...]                       # (TR, C) broadcast add
    for m in range(expand_dim):                           # unrolled: E sins per element
        f = const_ref[0, m]
        amp = const_ref[1, m]
        off = const_ref[2, m]
        # off - t*f == (time_end - t)*f + phi ; amp*sin(.) == a_s*sin(dt*f)+a_c*cos(dt*f)
        acc = acc + amp * jnp.sin(off - t * f)
    e = jnp.where(acc > 0, acc, alpha * acc)              # LeakyReLU(alpha)
    out_ref[...] = jnp.where(adj_ref[...] > 0, e, jnp.full_like(e, -9.0e15))


def _choose_row_tile(n_rows, n_cols, target_bytes=2 << 20):
    """Row tile: multiple of 8, ~target_bytes per output tile, and (when the row count
    allows) at least two grid steps so both v7x TensorCores get work."""
    if n_rows <= 8:
        return n_rows
    rows = min(n_rows, max(8, target_bytes // (4 * max(n_cols, 1))))
    if n_rows >= 16:
        half = -(-((n_rows + 1) // 2) // 8) * 8           # ceil(ceil(n/2) / 8) * 8
        rows = min(rows, half)
    rows = max(8, (rows // 8) * 8)
    return min(rows, n_rows)


def gat_attention_logits(const, timestamp, adj, pair_row_i, pair_col_j, *, alpha=0.05):
    """Fused Pallas computation of the masked pre-softmax logits e (shape (N, N))."""
    timestamp = jnp.asarray(timestamp, jnp.float32)
    adj = jnp.asarray(adj, jnp.float32)
    R, C = timestamp.shape
    E = const.shape[1]
    TR = _choose_row_tile(R, C)
    grid = (pl.cdiv(R, TR),)

    kernel = functools.partial(_gat_logits_kernel, expand_dim=E, alpha=float(alpha))
    return pl.pallas_call(
        kernel,
        out_shape=jax.ShapeDtypeStruct((R, C), jnp.float32),
        grid_spec=pltpu.PrefetchScalarGridSpec(
            num_scalar_prefetch=1,                         # (3, E) constants -> SMEM
            grid=grid,
            in_specs=[
                pl.BlockSpec((TR, C), lambda i, c: (i, 0)),   # timestamp rows (lane-dense)
                pl.BlockSpec((TR, C), lambda i, c: (i, 0)),   # adjacency rows
                pl.BlockSpec((TR, 1), lambda i, c: (i, 0)),   # per-row pair term
                pl.BlockSpec((1, C), lambda i, c: (0, 0)),    # per-col pair row, resident
            ],
            out_specs=pl.BlockSpec((TR, C), lambda i, c: (i, 0)),
        ),
        compiler_params=pltpu.CompilerParams(
            dimension_semantics=("parallel",),             # independent row tiles
        ),
        cost_estimate=pl.CostEstimate(
            flops=R * C * (4 * E + 6),
            transcendentals=R * C * E,
            bytes_accessed=4 * (3 * R * C + R + C + 3 * E),
        ),
    )(const, timestamp, adj, pair_row_i, pair_col_j)


# ---------------------------------------------------------------------------
# GraphAttentionLayer_edit forward (JAX glue around the fused Pallas kernel)
# ---------------------------------------------------------------------------
def _leaky_relu(x, alpha):
    return jnp.where(x > 0, x, alpha * x)


def _layer_norm(x, weight, bias, eps=1e-6):
    mu = jnp.mean(x, axis=-1, keepdims=True)
    var = jnp.mean(jnp.square(x - mu), axis=-1, keepdims=True)
    return (x - mu) / jnp.sqrt(var + eps) * weight + bias


def graph_attention_layer_edit(ini_feature, adj, timestamp, a, time_end, params, alpha=0.05):
    """Forward pass of GraphAttentionLayer_edit (eval mode) using the fused Pallas kernel."""
    W = jnp.asarray(params["W"], jnp.float32)
    basis_freq = jnp.asarray(params["basis_freq"], jnp.float32)

    z = jnp.asarray(ini_feature, jnp.float32) @ W                 # (N, F)
    N, F = z.shape
    a_vec = jnp.asarray(a, jnp.float32)[:, 0]                     # (2F,)

    # a_input[i,j] = concat(z[i], z[j])  =>  (a_input @ a)[i,j] = pi[i] + pj[j]
    pi = (z @ a_vec[:F]).reshape(N, 1)
    pj = (z @ a_vec[F:]).reshape(1, N)

    # Fold each interleaved TimeEncode sin/cos pair and its two `a` coefficients into one
    # amplitude/phase, and fold dt = time_end - t into a per-frequency phase offset.
    a_sin = a_vec[0::2]
    a_cos = a_vec[1::2]
    amp = jnp.sqrt(a_sin * a_sin + a_cos * a_cos)
    phi = jnp.arctan2(a_cos, a_sin)
    off = jnp.float32(time_end) * basis_freq + phi
    const = jnp.stack([basis_freq, amp, off], axis=0)             # (3, F) -> SMEM prefetch

    e_masked = gat_attention_logits(const, timestamp, adj, pi, pj, alpha=alpha)

    attention = jax.nn.softmax(e_masked, axis=1)
    # TODO(synk): F.dropout(attention, p) is stochastic (training mode); eval mode => no-op.
    temp = attention @ z + z
    # TODO(synk): for large N, fuse mask + softmax + attention@z flash-style in Pallas
    # instead of materializing the (N, N) attention matrix in HBM.
    return _layer_norm(temp, params["ln_weight"], params["ln_bias"], eps=1e-6)


def graph_attention_layer_edit_reference(ini_feature, adj, timestamp, a, time_end, params,
                                         alpha=0.05):
    """Literal JAX port of the PyTorch forward (explicit a_input, explicit sin/cos interleave)."""
    W = params["W"]
    basis_freq = params["basis_freq"]

    z = ini_feature @ W
    N, F = z.shape
    a_input = jnp.concatenate(
        [jnp.tile(z, (1, N)).reshape(N * N, -1), jnp.tile(z, (N, 1))], axis=1
    ).reshape(N, N, 2 * F)

    dt = time_end * jnp.ones_like(timestamp) - timestamp
    map_ts = dt[:, :, None] * basis_freq[None, None, :]
    time_emb = jnp.zeros((N, N, 2 * F), jnp.float32)
    time_emb = time_emb.at[:, :, 0::2].set(jnp.sin(map_ts))
    time_emb = time_emb.at[:, :, 1::2].set(jnp.cos(map_ts))

    e = _leaky_relu(jnp.matmul(a_input + time_emb, a)[:, :, 0], alpha)
    attention = jnp.where(adj > 0, e, jnp.full_like(e, -9.0e15))
    attention = jax.nn.softmax(attention, axis=1)
    temp = attention @ z + z
    return _layer_norm(temp, params["ln_weight"], params["ln_bias"], eps=1e-6)


if __name__ == "__main__":
    key = jax.random.PRNGKey(0)
    k_feat, k_w, k_a, k_adj, k_time = jax.random.split(key, 5)

    N, in_dim, out_dim = 8, 32, 16             # time_dim = 2*out_dim = 32
    ini_feature = jax.random.normal(k_feat, (N, in_dim), dtype=jnp.float32) * 0.5
    bound = 1.414 * math.sqrt(6.0 / (in_dim + out_dim))   # xavier_uniform, gain=1.414
    W = jax.random.uniform(k_w, (in_dim, out_dim), jnp.float32, -bound, bound)
    a = jax.random.normal(k_a, (2 * out_dim, 1), dtype=jnp.float32) * 0.2
    adj = (jax.random.uniform(k_adj, (N, N)) > 0.5).astype(jnp.float32)
    adj = jnp.maximum(adj, jnp.eye(N, dtype=jnp.float32))         # keep self-loops
    timestamp = jax.random.uniform(k_time, (N, N), dtype=jnp.float32) * 100.0
    time_end = 100.0

    params = {
        "W": W,
        "basis_freq": jnp.asarray(1.0 / 10.0 ** np.linspace(0, 9, out_dim), jnp.float32),
        "ln_weight": jnp.ones((out_dim,), jnp.float32),
        "ln_bias": jnp.zeros((out_dim,), jnp.float32),
    }

    z_emb = jax.block_until_ready(
        graph_attention_layer_edit(ini_feature, adj, timestamp, a, time_end, params)
    )
    z_ref = graph_attention_layer_edit_reference(
        ini_feature, adj, timestamp, a, time_end, params
    )
    # Tolerance: the kernel evaluates a_s*sin(dt*f)+a_c*cos(dt*f) as amp*sin(off - t*f)
    # (mathematically identical); the only deviation from the literal interleaved path is
    # f32 rounding of the phase-folded argument (|dt*f| up to ~100 here).
    np.testing.assert_allclose(np.asarray(z_emb), np.asarray(z_ref), rtol=5e-4, atol=5e-4)

    print("KERNEL_OK")
</pallas_src>

<mosaic_0001>
module attributes {stable_mosaic.version = 11 : i64} {
  func.func @_gat_logits_kernel(%arg0: i32, %arg1: memref<3x16xf32, #tpu.memory_space<smem>>, %arg2: memref<8x8xf32, #tpu.memory_space<vmem>>, %arg3: memref<8x8xf32, #tpu.memory_space<vmem>>, %arg4: memref<8x1xf32, #tpu.memory_space<vmem>>, %arg5: memref<1x8xf32, #tpu.memory_space<vmem>>, %arg6: memref<8x8xf32, #tpu.memory_space<vmem>>) attributes {dimension_semantics = [#tpu.dimension_semantics<parallel>], iteration_bounds = array<i64: 1>, scalar_prefetch = 1 : i64, scratch_operands = 0 : i64, tpu.core_type = #tpu.core_type<tc>, window_params = [{transform_indices = @transform_0, window_bounds = array<i64: 8, 8>}, {transform_indices = @transform_1, window_bounds = array<i64: 8, 8>}, {transform_indices = @transform_2, window_bounds = array<i64: 8, 1>}, {pipeline_mode = #tpu.pipeline_mode<synchronous>, transform_indices = @transform_3, window_bounds = array<i64: 1, 8>}, {transform_indices = @transform_4, window_bounds = array<i64: 8, 8>}]} {
    %c0 = arith.constant 0 : index
    %c0_0 = arith.constant 0 : index
    %0 = vector.load %arg2[%c0, %c0_0] : memref<8x8xf32, #tpu.memory_space<vmem>>, vector<8x8xf32>
    %c0_1 = arith.constant 0 : index
    %c0_2 = arith.constant 0 : index
    %1 = vector.load %arg4[%c0_1, %c0_2] : memref<8x1xf32, #tpu.memory_space<vmem>>, vector<8x1xf32>
    %c0_3 = arith.constant 0 : index
    %c0_4 = arith.constant 0 : index
    %2 = vector.load %arg5[%c0_3, %c0_4] : memref<1x8xf32, #tpu.memory_space<vmem>>, vector<1x8xf32>
    %3 = vector.broadcast %1 : vector<8x1xf32> to vector<8x8xf32>
    %4 = vector.broadcast %2 : vector<1x8xf32> to vector<8x8xf32>
    %5 = arith.addf %3, %4 : vector<8x8xf32>
    %c0_5 = arith.constant 0 : index
    %c0_6 = arith.constant 0 : index
    %6 = memref.load %arg1[%c0_5, %c0_6] : memref<3x16xf32, #tpu.memory_space<smem>>
    %c1 = arith.constant 1 : index
    %c0_7 = arith.constant 0 : index
    %7 = memref.load %arg1[%c1, %c0_7] : memref<3x16xf32, #tpu.memory_space<smem>>
    %c2 = arith.constant 2 : index
    %c0_8 = arith.constant 0 : index
    %8 = memref.load %arg1[%c2, %c0_8] : memref<3x16xf32, #tpu.memory_space<smem>>
    %9 = vector.broadcast %6 : f32 to vector<8x8xf32>
    %10 = arith.mulf %0, %9 : vector<8x8xf32>
    %11 = vector.broadcast %8 : f32 to vector<8x8xf32>
    %12 = arith.subf %11, %10 : vector<8x8xf32>
    %13 = math.sin %12 : vector<8x8xf32>
    %14 = vector.broadcast %7 : f32 to vector<8x8xf32>
    %15 = arith.mulf %14, %13 : vector<8x8xf32>
    %16 = arith.addf %5, %15 : vector<8x8xf32>
    %c0_9 = arith.constant 0 : index
    %c1_10 = arith.constant 1 : index
    %17 = memref.load %arg1[%c0_9, %c1_10] : memref<3x16xf32, #tpu.memory_space<smem>>
    %c1_11 = arith.constant 1 : index
    %c1_12 = arith.constant 1 : index
    %18 = memref.load %arg1[%c1_11, %c1_12] : memref<3x16xf32, #tpu.memory_space<smem>>
    %c2_13 = arith.constant 2 : index
    %c1_14 = arith.constant 1 : index
    %19 = memref.load %arg1[%c2_13, %c1_14] : memref<3x16xf32, #tpu.memory_space<smem>>
    %20 = vector.broadcast %17 : f32 to vector<8x8xf32>
    %21 = arith.mulf %0, %20 : vector<8x8xf32>
    %22 = vector.broadcast %19 : f32 to vector<8x8xf32>
    %23 = arith.subf %22, %21 : vector<8x8xf32>
    %24 = math.sin %23 : vector<8x8xf32>
    %25 = vector.broadcast %18 : f32 to vector<8x8xf32>
    %26 = arith.mulf %25, %24 : vector<8x8xf32>
    %27 = arith.addf %16, %26 : vector<8x8xf32>
    %c0_15 = arith.constant 0 : index
    %c2_16 = arith.constant 2 : index
    %28 = memref.load %arg1[%c0_15, %c2_16] : memref<3x16xf32, #tpu.memory_space<smem>>
    %c1_17 = arith.constant 1 : index
    %c2_18 = arith.constant 2 : index
    %29 = memref.load %arg1[%c1_17, %c2_18] : memref<3x16xf32, #tpu.memory_space<smem>>
    %c2_19 = arith.constant 2 : index
    %c2_20 = arith.constant 2 : index
    %30 = memref.load %arg1[%c2_19, %c2_20] : memref<3x16xf32, #tpu.memory_space<smem>>
    %31 = vector.broadcast %28 : f32 to vector<8x8xf32>
    %32 = arith.mulf %0, %31 : vector<8x8xf32>
    %33 = vector.broadcast %30 : f32 to vector<8x8xf32>
    %34 = arith.subf %33, %32 : vector<8x8xf32>
    %35 = math.sin %34 : vector<8x8xf32>
    %36 = vector.broadcast %29 : f32 to vector<8x8xf32>
    %37 = arith.mulf %36, %35 : vector<8x8xf32>
    %38 = arith.addf %27, %37 : vector<8x8xf32>
    %c0_21 = arith.constant 0 : index
    %c3 = arith.constant 3 : index
    %39 = memref.load %arg1[%c0_21, %c3] : memref<3x16xf32, #tpu.memory_space<smem>>
    %c1_22 = arith.constant 1 : index
    %c3_23 = arith.constant 3 : index
    %40 = memref.load %arg1[%c1_22, %c3_23] : memref<3x16xf32, #tpu.memory_space<smem>>
    %c2_24 = arith.constant 2 : index
    %c3_25 = arith.constant 3 : index
    %41 = memref.load %arg1[%c2_24, %c3_25] : memref<3x16xf32, #tpu.memory_space<smem>>
    %42 = vector.broadcast %39 : f32 to vector<8x8xf32>
    %43 = arith.mulf %0, %42 : vector<8x8xf32>
    %44 = vector.broadcast %41 : f32 to vector<8x8xf32>
    %45 = arith.subf %44, %43 : vector<8x8xf32>
    %46 = math.sin %45 : vector<8x8xf32>
    %47 = vector.broadcast %40 : f32 to vector<8x8xf32>
    %48 = arith.mulf %47, %46 : vector<8x8xf32>
    %49 = arith.addf %38, %48 : vector<8x8xf32>
    %c0_26 = arith.constant 0 : index
    %c4 = arith.constant 4 : index
    %50 = memref.load %arg1[%c0_26, %c4] : memref<3x16xf32, #tpu.memory_space<smem>>
    %c1_27 = arith.constant 1 : index
    %c4_28 = arith.constant 4 : index
    %51 = memref.load %arg1[%c1_27, %c4_28] : memref<3x16xf32, #tpu.memory_space<smem>>
    %c2_29 = arith.constant 2 : index
    %c4_30 = arith.constant 4 : index
    %52 = memref.load %arg1[%c2_29, %c4_30] : memref<3x16xf32, #tpu.memory_space<smem>>
    %53 = vector.broadcast %50 : f32 to vector<8x8xf32>
    %54 = arith.mulf %0, %53 : vector<8x8xf32>
    %55 = vector.broadcast %52 : f32 to vector<8x8xf32>
    %56 = arith.subf %55, %54 : vector<8x8xf32>
    %57 = math.sin %56 : vector<8x8xf32>
    %58 = vector.broadcast %51 : f32 to vector<8x8xf32>
    %59 = arith.mulf %58, %57 : vector<8x8xf32>
    %60 = arith.addf %49, %59 : vector<8x8xf32>
    %c0_31 = arith.constant 0 : index
    %c5 = arith.constant 5 : index
    %61 = memref.load %arg1[%c0_31, %c5] : memref<3x16xf32, #tpu.memory_space<smem>>
    %c1_32 = arith.constant 1 : index
    %c5_33 = arith.constant 5 : index
    %62 = memref.load %arg1[%c1_32, %c5_33] : memref<3x16xf32, #tpu.memory_space<smem>>
    %c2_34 = arith.constant 2 : index
    %c5_35 = arith.constant 5 : index
    %63 = memref.load %arg1[%c2_34, %c5_35] : memref<3x16xf32, #tpu.memory_space<smem>>
    %64 = vector.broadcast %61 : f32 to vector<8x8xf32>
    %65 = arith.mulf %0, %64 : vector<8x8xf32>
    %66 = vector.broadcast %63 : f32 to vector<8x8xf32>
    %67 = arith.subf %66, %65 : vector<8x8xf32>
    %68 = math.sin %67 : vector<8x8xf32>
    %69 = vector.broadcast %62 : f32 to vector<8x8xf32>
    %70 = arith.mulf %69, %68 : vector<8x8xf32>
    %71 = arith.addf %60, %70 : vector<8x8xf32>
    %c0_36 = arith.constant 0 : index
    %c6 = arith.constant 6 : index
    %72 = memref.load %arg1[%c0_36, %c6] : memref<3x16xf32, #tpu.memory_space<smem>>
    %c1_37 = arith.constant 1 : index
    %c6_38 = arith.constant 6 : index
    %73 = memref.load %arg1[%c1_37, %c6_38] : memref<3x16xf32, #tpu.memory_space<smem>>
    %c2_39 = arith.constant 2 : index
    %c6_40 = arith.constant 6 : index
    %74 = memref.load %arg1[%c2_39, %c6_40] : memref<3x16xf32, #tpu.memory_space<smem>>
    %75 = vector.broadcast %72 : f32 to vector<8x8xf32>
    %76 = arith.mulf %0, %75 : vector<8x8xf32>
    %77 = vector.broadcast %74 : f32 to vector<8x8xf32>
    %78 = arith.subf %77, %76 : vector<8x8xf32>
    %79 = math.sin %78 : vector<8x8xf32>
    %80 = vector.broadcast %73 : f32 to vector<8x8xf32>
    %81 = arith.mulf %80, %79 : vector<8x8xf32>
    %82 = arith.addf %71, %81 : vector<8x8xf32>
    %c0_41 = arith.constant 0 : index
    %c7 = arith.constant 7 : index
    %83 = memref.load %arg1[%c0_41, %c7] : memref<3x16xf32, #tpu.memory_space<smem>>
    %c1_42 = arith.constant 1 : index
    %c7_43 = arith.constant 7 : index
    %84 = memref.load %arg1[%c1_42, %c7_43] : memref<3x16xf32, #tpu.memory_space<smem>>
    %c2_44 = arith.constant 2 : index
    %c7_45 = arith.constant 7 : index
    %85 = memref.load %arg1[%c2_44, %c7_45] : memref<3x16xf32, #tpu.memory_space<smem>>
    %86 = vector.broadcast %83 : f32 to vector<8x8xf32>
    %87 = arith.mulf %0, %86 : vector<8x8xf32>
    %88 = vector.broadcast %85 : f32 to vector<8x8xf32>
    %89 = arith.subf %88, %87 : vector<8x8xf32>
    %90 = math.sin %89 : vector<8x8xf32>
    %91 = vector.broadcast %84 : f32 to vector<8x8xf32>
    %92 = arith.mulf %91, %90 : vector<8x8xf32>
    %93 = arith.addf %82, %92 : vector<8x8xf32>
    %c0_46 = arith.constant 0 : index
    %c8 = arith.constant 8 : index
    %94 = memref.load %arg1[%c0_46, %c8] : memref<3x16xf32, #tpu.memory_space<smem>>
    %c1_47 = arith.constant 1 : index
    %c8_48 = arith.constant 8 : index
    %95 = memref.load %arg1[%c1_47, %c8_48] : memref<3x16xf32, #tpu.memory_space<smem>>
    %c2_49 = arith.constant 2 : index
    %c8_50 = arith.constant 8 : index
    %96 = memref.load %arg1[%c2_49, %c8_50] : memref<3x16xf32, #tpu.memory_space<smem>>
    %97 = vector.broadcast %94 : f32 to vector<8x8xf32>
    %98 = arith.mulf %0, %97 : vector<8x8xf32>
    %99 = vector.broadcast %96 : f32 to vector<8x8xf32>
    %100 = arith.subf %99, %98 : vector<8x8xf32>
    %101 = math.sin %100 : vector<8x8xf32>
    %102 = vector.broadcast %95 : f32 to vector<8x8xf32>
    %103 = arith.mulf %102, %101 : vector<8x8xf32>
    %104 = arith.addf %93, %103 : vector<8x8xf32>
    %c0_51 = arith.constant 0 : index
    %c9 = arith.constant 9 : index
    %105 = memref.load %arg1[%c0_51, %c9] : memref<3x16xf32, #tpu.memory_space<smem>>
    %c1_52 = arith.constant 1 : index
    %c9_53 = arith.constant 9 : index
    %106 = memref.load %arg1[%c1_52, %c9_53] : memref<3x16xf32, #tpu.memory_space<smem>>
    %c2_54 = arith.constant 2 : index
    %c9_55 = arith.constant 9 : index
    %107 = memref.load %arg1[%c2_54, %c9_55] : memref<3x16xf32, #tpu.memory_space<smem>>
    %108 = vector.broadcast %105 : f32 to vector<8x8xf32>
    %109 = arith.mulf %0, %108 : vector<8x8xf32>
    %110 = vector.broadcast %107 : f32 to vector<8x8xf32>
    %111 = arith.subf %110, %109 : vector<8x8xf32>
    %112 = math.sin %111 : vector<8x8xf32>
    %113 = vector.broadcast %106 : f32 to vector<8x8xf32>
    %114 = arith.mulf %113, %112 : vector<8x8xf32>
    %115 = arith.addf %104, %114 : vector<8x8xf32>
    %c0_56 = arith.constant 0 : index
    %c10 = arith.constant 10 : index
    %116 = memref.load %arg1[%c0_56, %c10] : memref<3x16xf32, #tpu.memory_space<smem>>
    %c1_57 = arith.constant 1 : index
    %c10_58 = arith.constant 10 : index
    %117 = memref.load %arg1[%c1_57, %c10_58] : memref<3x16xf32, #tpu.memory_space<smem>>
    %c2_59 = arith.constant 2 : index
    %c10_60 = arith.constant 10 : index
    %118 = memref.load %arg1[%c2_59, %c10_60] : memref<3x16xf32, #tpu.memory_space<smem>>
    %119 = vector.broadcast %116 : f32 to vector<8x8xf32>
    %120 = arith.mulf %0, %119 : vector<8x8xf32>
    %121 = vector.broadcast %118 : f32 to vector<8x8xf32>
    %122 = arith.subf %121, %120 : vector<8x8xf32>
    %123 = math.sin %122 : vector<8x8xf32>
    %124 = vector.broadcast %117 : f32 to vector<8x8xf32>
    %125 = arith.mulf %124, %123 : vector<8x8xf32>
    %126 = arith.addf %115, %125 : vector<8x8xf32>
    %c0_61 = arith.constant 0 : index
    %c11 = arith.constant 11 : index
    %127 = memref.load %arg1[%c0_61, %c11] : memref<3x16xf32, #tpu.memory_space<smem>>
    %c1_62 = arith.constant 1 : index
    %c11_63 = arith.constant 11 : index
    %128 = memref.load %arg1[%c1_62, %c11_63] : memref<3x16xf32, #tpu.memory_space<smem>>
    %c2_64 = arith.constant 2 : index
    %c11_65 = arith.constant 11 : index
    %129 = memref.load %arg1[%c2_64, %c11_65] : memref<3x16xf32, #tpu.memory_space<smem>>
    %130 = vector.broadcast %127 : f32 to vector<8x8xf32>
    %131 = arith.mulf %0, %130 : vector<8x8xf32>
    %132 = vector.broadcast %129 : f32 to vector<8x8xf32>
    %133 = arith.subf %132, %131 : vector<8x8xf32>
    %134 = math.sin %133 : vector<8x8xf32>
    %135 = vector.broadcast %128 : f32 to vector<8x8xf32>
    %136 = arith.mulf %135, %134 : vector<8x8xf32>
    %137 = arith.addf %126, %136 : vector<8x8xf32>
    %c0_66 = arith.constant 0 : index
    %c12 = arith.constant 12 : index
    %138 = memref.load %arg1[%c0_66, %c12] : memref<3x16xf32, #tpu.memory_space<smem>>
    %c1_67 = arith.constant 1 : index
    %c12_68 = arith.constant 12 : index
    %139 = memref.load %arg1[%c1_67, %c12_68] : memref<3x16xf32, #tpu.memory_space<smem>>
    %c2_69 = arith.constant 2 : index
    %c12_70 = arith.constant 12 : index
    %140 = memref.load %arg1[%c2_69, %c12_70] : memref<3x16xf32, #tpu.memory_space<smem>>
    %141 = vector.broadcast %138 : f32 to vector<8x8xf32>
    %142 = arith.mulf %0, %141 : vector<8x8xf32>
    %143 = vector.broadcast %140 : f32 to vector<8x8xf32>
    %144 = arith.subf %143, %142 : vector<8x8xf32>
    %145 = math.sin %144 : vector<8x8xf32>
    %146 = vector.broadcast %139 : f32 to vector<8x8xf32>
    %147 = arith.mulf %146, %145 : vector<8x8xf32>
    %148 = arith.addf %137, %147 : vector<8x8xf32>
    %c0_71 = arith.constant 0 : index
    %c13 = arith.constant 13 : index
    %149 = memref.load %arg1[%c0_71, %c13] : memref<3x16xf32, #tpu.memory_space<smem>>
    %c1_72 = arith.constant 1 : index
    %c13_73 = arith.constant 13 : index
    %150 = memref.load %arg1[%c1_72, %c13_73] : memref<3x16xf32, #tpu.memory_space<smem>>
    %c2_74 = arith.constant 2 : index
    %c13_75 = arith.constant 13 : index
    %151 = memref.load %arg1[%c2_74, %c13_75] : memref<3x16xf32, #tpu.memory_space<smem>>
    %152 = vector.broadcast %149 : f32 to vector<8x8xf32>
    %153 = arith.mulf %0, %152 : vector<8x8xf32>
    %154 = vector.broadcast %151 : f32 to vector<8x8xf32>
    %155 = arith.subf %154, %153 : vector<8x8xf32>
    %156 = math.sin %155 : vector<8x8xf32>
    %157 = vector.broadcast %150 : f32 to vector<8x8xf32>
    %158 = arith.mulf %157, %156 : vector<8x8xf32>
    %159 = arith.addf %148, %158 : vector<8x8xf32>
    %c0_76 = arith.constant 0 : index
    %c14 = arith.constant 14 : index
    %160 = memref.load %arg1[%c0_76, %c14] : memref<3x16xf32, #tpu.memory_space<smem>>
    %c1_77 = arith.constant 1 : index
    %c14_78 = arith.constant 14 : index
    %161 = memref.load %arg1[%c1_77, %c14_78] : memref<3x16xf32, #tpu.memory_space<smem>>
    %c2_79 = arith.constant 2 : index
    %c14_80 = arith.constant 14 : index
    %162 = memref.load %arg1[%c2_79, %c14_80] : memref<3x16xf32, #tpu.memory_space<smem>>
    %163 = vector.broadcast %160 : f32 to vector<8x8xf32>
    %164 = arith.mulf %0, %163 : vector<8x8xf32>
    %165 = vector.broadcast %162 : f32 to vector<8x8xf32>
    %166 = arith.subf %165, %164 : vector<8x8xf32>
    %167 = math.sin %166 : vector<8x8xf32>
    %168 = vector.broadcast %161 : f32 to vector<8x8xf32>
    %169 = arith.mulf %168, %167 : vector<8x8xf32>
    %170 = arith.addf %159, %169 : vector<8x8xf32>
    %c0_81 = arith.constant 0 : index
    %c15 = arith.constant 15 : index
    %171 = memref.load %arg1[%c0_81, %c15] : memref<3x16xf32, #tpu.memory_space<smem>>
    %c1_82 = arith.constant 1 : index
    %c15_83 = arith.constant 15 : index
    %172 = memref.load %arg1[%c1_82, %c15_83] : memref<3x16xf32, #tpu.memory_space<smem>>
    %c2_84 = arith.constant 2 : index
    %c15_85 = arith.constant 15 : index
    %173 = memref.load %arg1[%c2_84, %c15_85] : memref<3x16xf32, #tpu.memory_space<smem>>
    %174 = vector.broadcast %171 : f32 to vector<8x8xf32>
    %175 = arith.mulf %0, %174 : vector<8x8xf32>
    %176 = vector.broadcast %173 : f32 to vector<8x8xf32>
    %177 = arith.subf %176, %175 : vector<8x8xf32>
    %178 = math.sin %177 : vector<8x8xf32>
    %179 = vector.broadcast %172 : f32 to vector<8x8xf32>
    %180 = arith.mulf %179, %178 : vector<8x8xf32>
    %181 = arith.addf %170, %180 : vector<8x8xf32>
    %cst = arith.constant 0.000000e+00 : f32
    %182 = vector.broadcast %cst : f32 to vector<8x8xf32>
    %183 = arith.cmpf ogt, %181, %182 : vector<8x8xf32>
    %cst_86 = arith.constant 5.000000e-02 : f32
    %184 = vector.broadcast %cst_86 : f32 to vector<8x8xf32>
    %185 = arith.mulf %184, %181 : vector<8x8xf32>
    %186 = arith.select %183, %181, %185 : vector<8x8xi1>, vector<8x8xf32>
    %c0_87 = arith.constant 0 : index
    %c0_88 = arith.constant 0 : index
    %187 = vector.load %arg3[%c0_87, %c0_88] : memref<8x8xf32, #tpu.memory_space<vmem>>, vector<8x8xf32>
    %cst_89 = arith.constant 0.000000e+00 : f32
    %188 = vector.broadcast %cst_89 : f32 to vector<8x8xf32>
    %189 = arith.cmpf ogt, %187, %188 : vector<8x8xf32>
    %cst_90 = arith.constant -9.000000e+15 : f32
    %190 = vector.broadcast %cst_90 : f32 to vector<8x8xf32>
    %191 = arith.select %189, %186, %190 : vector<8x8xi1>, vector<8x8xf32>
    %c0_91 = arith.constant 0 : index
    %c0_92 = arith.constant 0 : index
    %192 = vector.load %arg6[%c0_91, %c0_92] : memref<8x8xf32, #tpu.memory_space<vmem>>, vector<8x8xf32>
    tpu.vector_store %arg6[%c0_91, %c0_92], %191 {strides = array<i32>} : memref<8x8xf32, #tpu.memory_space<vmem>>, vector<8x8xf32>,
    return
  }
  func.func @transform_0(%arg0: i32, %arg1: memref<3x16xf32, #tpu.memory_space<smem>>) -> (i32, i32) {
    %c0_i32 = arith.constant 0 : i32
    %c0_i32_0 = arith.constant 0 : i32
    return %arg0, %c0_i32 : i32, i32
  }
  func.func @transform_1(%arg0: i32, %arg1: memref<3x16xf32, #tpu.memory_space<smem>>) -> (i32, i32) {
    %c0_i32 = arith.constant 0 : i32
    %c0_i32_0 = arith.constant 0 : i32
    return %arg0, %c0_i32 : i32, i32
  }
  func.func @transform_2(%arg0: i32, %arg1: memref<3x16xf32, #tpu.memory_space<smem>>) -> (i32, i32) {
    %c0_i32 = arith.constant 0 : i32
    %c0_i32_0 = arith.constant 0 : i32
    return %arg0, %c0_i32 : i32, i32
  }
  func.func @transform_3(%arg0: i32, %arg1: memref<3x16xf32, #tpu.memory_space<smem>>) -> (i32, i32) {
    %c0_i32 = arith.constant 0 : i32
    %c0_i32_0 = arith.constant 0 : i32
    %c0_i32_1 = arith.constant 0 : i32
    return %c0_i32, %c0_i32_0 : i32, i32
  }
  func.func @transform_4(%arg0: i32, %arg1: memref<3x16xf32, #tpu.memory_space<smem>>) -> (i32, i32) {
    %c0_i32 = arith.constant 0 : i32
    %c0_i32_0 = arith.constant 0 : i32
    return %arg0, %c0_i32 : i32, i32
  }
}

</mosaic_0001>

<llo_original>
// kernel: tpu_custom_call.1
$region0: #{tpu_custom_call.1}
  #allocation0 [shape = 'u32[]', space=smem, size = 0x4, offset = 0x4, fixed_abs, tag = 'smem constant byte address 0x4 - core index']
  #allocation1 [shape = 'u32[72,128]{1,0:T(1,128)}', space=vmem, size = 0x9000, scoped, tag = 'internal scratch']
  #allocation2 [shape = 's32[1]{0}', space=sflag, size = 0x4, scoped, tag = 'scoped memory for tpu_custom_call.1']
  #allocation3 [shape = 'u8[2048]{0}', space=smem, size = 0x800, scoped, tag = 'prefetched SMEM operand 0']
  %s0 = inlined_call_operand.hbm [shape: f32[3,16], index: 0, kind: input, shape index: {}]
  %s1 = inlined_call_operand.vmem [shape: f32[8,8], index: 1, kind: input, shape index: {}]
  %s2 = inlined_call_operand.hbm [shape: f32[8,8], index: 2, kind: input, shape index: {}]
  %s3 = inlined_call_operand.vmem [shape: f32[8,1], index: 3, kind: input, shape index: {}]
  %s4 = inlined_call_operand.vmem [shape: f32[1,8], index: 4, kind: input, shape index: {}]
  %s5 = inlined_call_operand.hbm [shape: f32[8,8], index: 5, kind: output, shape index: {}]
  %s6 = sld [smem:[#allocation0]]
  $region30: #{tpu_custom_call.1} parent=0
    _
  %s8 = ssub.s32 1, %s6
  %s9 = scalar_select 0, %s8, %s6
  %s11 = sshll.u32 %s0, 4
  %s12 = int_to_ptr.hbm [resolvable:$true] %s11
  %14 = dma.hbm_to_smem %s12, 64, [#allocation3], [#allocation2]
  %16 = dma.done [#allocation2], 64
  %17 = sfence
  $region1: #{tpu_custom_call.1} parent=0
    #allocation4 [shape = 'u8[4096]{0}', space=vmem, size = 0x1000, scoped, tag = 'input window, operand 2, single buffered']
    #allocation5 [shape = 's32[1]{0}', space=sflag, size = 0x4, scoped, tag = 'scoped memory for tpu_custom_call.1']
    #allocation6 [shape = 's32[1]{0}', space=sflag, size = 0x4, scoped, tag = 'scoped memory for tpu_custom_call.1']
    #allocation7 [shape = 'u8[4096]{0}', space=vmem, size = 0x1000, scoped, tag = 'output window, operand 0, single buffered']
    %18 = vsyncpa [#allocation5], 0
    %19 = vsyncpa [#allocation6], 0
    // Predicated region
    $region2: #{tpu_custom_call.1} parent=1 // pred_check
      _
    $region3: #{tpu_custom_call.1} parent=1 // pred_check_branch
      %21 = sbr.rel (0) target = $region5
    $region4: #{tpu_custom_call.1} parent=1 // pred_region
      _
    $region5: #{tpu_custom_call.1} parent=1 // pred_fallthru
      _
    // Predicated region
    $region6: #{tpu_custom_call.1} parent=1 // pred_check
      _
    $region7: #{tpu_custom_call.1} parent=1 // pred_check_branch
      %23 = sbr.rel (0) target = $region9
    $region8: #{tpu_custom_call.1} parent=1 // pred_region
      %25 = vsyncadd [#allocation5], 0
      %s27 = sshll.u32 %s2, 4
      %s28 = int_to_ptr.hbm [resolvable:$true] %s27
      %s29 = sshll.u32 [#allocation4], 4
      %s30 = int_to_ptr.vmem [resolvable:$true] %s29
      %32 = dma.hbm_to_vmem [thread:$0]  %s28, 128, %s30, [#allocation5]
    $region9: #{tpu_custom_call.1} parent=1 // pred_fallthru
      _
    // Predicated region
    $region10: #{tpu_custom_call.1} parent=1 // pred_check
      _
    $region11: #{tpu_custom_call.1} parent=1 // pred_check_branch
      %34 = sbr.rel (0) target = $region13
    $region12: #{tpu_custom_call.1} parent=1 // pred_region
      _
    $region13: #{tpu_custom_call.1} parent=1 // pred_fallthru
      _
    // Predicated region
    $region14: #{tpu_custom_call.1} parent=1 // pred_check
      _
    $region15: #{tpu_custom_call.1} parent=1 // pred_check_branch
      %36 = sbr.rel (0) target = $region17
    $region16: #{tpu_custom_call.1} parent=1 // pred_region
      _
    $region17: #{tpu_custom_call.1} parent=1 // pred_fallthru
      _
    // Predicated region
    $region18: #{tpu_custom_call.1} parent=1 // pred_check
      _
    $region19: #{tpu_custom_call.1} parent=1 // pred_check_branch
      %38 = sbr.rel (0) target = $region21
    $region20: #{tpu_custom_call.1} parent=1 // pred_region
      %40 = dma.done [#allocation5], 128
    $region21: #{tpu_custom_call.1} parent=1 // pred_fallthru
      _
    %v41 = vld [vmem:[%s1] sm:$0xff]
    %v42 = vld [vmem:[%s3] sm:$0xff]
    %v43 = vld [vmem:[%s4] sm:$0x1]
    %45 = vset.pattern.permute.xlu0 0
    %46 = vperm.xlu0 %45, %v42
    %v47 = vpop.permute.xlu0 %46
    %v50 = vperm.slane %v43, 0
    %v52 = vadd.f32 %v47, %v50
    %s53 = sld [smem:[#allocation3]]
    %s54 = sld [smem:[#allocation3 + $0x80]]
    %s55 = sld [smem:[#allocation3 + $0x100]]
    %v56 = vstv %s53
    %v57 = vmul.f32 %v41, %v56
    %v58 = vstv %s55
    %v59 = vsub.f32 %v58, %v57
    %v60 = vand.u32 2147483647, %v59
    %vm61 = vcmp.le.f32.partialorder %v60, 0.7853982
    %vm62 = vcmp.lt.s32.totalorder %v59, 0
    %v63 = vand.u32 %v59, 2139095040
    %v64 = vshrl.u32 %v63, 23
    %v65 = vsub.s32 %v64, 127
    %v66 = vand.u32 2147483647, %v59
    %v67 = vand.u32 %v66, 8388607
    %v68 = vor.u32 %v67, 8388608
    %v69 = vsub.s32 0, %v68
    %v70 = vadd.s32 %v65, 1
    %vm71 = vcmp.gt.s32.totalorder %v70, 0
    %v72 = vsel %vm71, %v70, 0
    %v73 = vshrl.u32 %v72, 5
    %v74 = vand.u32 %v72, 31
    %v75 = vsub.s32 32, %v74
    %v76 = vshrl.u32 683565275, %v75
    %v77 = vshll.u32 683565275, %v74
    %v78 = vshrl.u32 2475754826, %v75
    %v79 = vor.u32 %v77, %v78
    %v80 = vshll.u32 2475754826, %v74
    %v81 = vshrl.u32 2131351028, %v75
    %v82 = vor.u32 %v80, %v81
    %v83 = vshll.u32 2131351028, %v74
    %v84 = vshrl.u32 2102212464, %v75
    %v85 = vor.u32 %v83, %v84
    %v86 = vshll.u32 2102212464, %v74
    %v87 = vshrl.u32 920167782, %v75
    %v88 = vor.u32 %v86, %v87
    %v89 = vshll.u32 920167782, %v74
    %v90 = vshrl.u32 1326507024, %v75
    %v91 = vor.u32 %v89, %v90
    %vm92 = vcmp.lt.s32.totalorder %v73, 1
    %vm93 = vcmp.lt.s32.totalorder %v73, 2
    %vm94 = vcmp.lt.s32.totalorder %v73, 3
    %vm95 = vcmp.lt.s32.totalorder %v73, 4
    %v96 = vsel %vm92, %v76, %v79
    %v97 = vsel %vm95, %v85, 2102212464
    %v98 = vsel %vm94, %v82, %v97
    %v99 = vsel %vm93, %v96, %v98
    %v100 = vsel %vm92, %v79, %v82
    %v101 = vsel %vm95, %v88, 920167782
    %v102 = vsel %vm94, %v85, %v101
    %v103 = vsel %vm93, %v100, %v102
    %v104 = vsel %vm92, %v82, %v85
    %v105 = vsel %vm95, %v91, 1326507024
    %v106 = vsel %vm94, %v88, %v105
    %v107 = vsel %vm93, %v104, %v106
    %v108 = vshll.u32 %v68, 8
    %v109 = vand.u32 %v108, 65535
    %v110 = vshrl.u32 %v108, 16
    %v111 = vand.u32 %v107, 65535
    %v112 = vshrl.u32 %v107, 16
    %v113 = vmul.u32 %v109, %v111
    %v114 = vmul.u32 %v109, %v112
    %v115 = vmul.u32 %v110, %v111
    %v116 = vmul.u32 %v110, %v112
    %v117 = vshll.u32 %v114, 16
    %v118 = vshrl.u32 %v114, 16
    %v119 = vshll.u32 %v115, 16
    %v120 = vshrl.u32 %v115, 16
    %vm121 = vc.u32 %v113, %v117
    %v122 = vsel %vm121, 1, 0
    %v123 = vadd.s32 %v113, %v117
    %v124 = vadd.s32 %v116, %v122
    %vm125 = vc.u32 %v123, %v119
    %v126 = vsel %vm125, 1, 0
    %v127 = vadd.s32 %v123, %v119
    %v128 = vadd.s32 %v124, %v126
    %v129 = vadd.s32 %v128, %v118
    %v130 = vadd.s32 %v129, %v120
    %v131 = vand.u32 %v108, 65535
    %v132 = vshrl.u32 %v108, 16
    %v133 = vand.u32 %v103, 65535
    %v134 = vshrl.u32 %v103, 16
    %v135 = vmul.u32 %v131, %v133
    %v136 = vmul.u32 %v131, %v134
    %v137 = vmul.u32 %v132, %v133
    %v138 = vmul.u32 %v132, %v134
    %v139 = vshll.u32 %v136, 16
    %v140 = vshrl.u32 %v136, 16
    %v141 = vshll.u32 %v137, 16
    %v142 = vshrl.u32 %v137, 16
    %vm143 = vc.u32 %v135, %v139
    %v144 = vsel %vm143, 1, 0
    %v145 = vadd.s32 %v135, %v139
    %v146 = vadd.s32 %v138, %v144
    %vm147 = vc.u32 %v145, %v141
    %v148 = vsel %vm147, 1, 0
    %v149 = vadd.s32 %v145, %v141
    %v150 = vadd.s32 %v146, %v148
    %v151 = vadd.s32 %v150, %v140
    %v152 = vadd.s32 %v151, %v142
    %v153 = vmul.u32 %v108, %v99
    %v154 = vadd.s32 %v130, %v149
    %vm155 = vc.u32 %v130, %v149
    %v156 = vadd.s32 %v152, 1
    %v157 = vsel %vm155, %v156, %v152
    %v158 = vadd.s32 %v153, %v157
    %v159 = vadd.s32 %v158, 536870912
    %v160 = vshrl.u32 %v159, 30
    %v161 = vshll.u32 %v160, 30
    %v162 = vsub.s32 %v158, %v161
    %vm163 = vcmp.lt.s32.totalorder %v162, 0
    %v164 = vsub.s32 0, %v162
    %v165 = vsel %vm163, %v164, %v162
    %v166 = vclz %v165
    %v167 = vsub.s32 %v166, 2
    %vm168 = vcmp.gt.s32.totalorder 0, %v167
    %v169 = vsel %vm168, 0, %v167
    %v170 = vsub.s32 32, %v169
    %v171 = vshll.u32 %v162, %v169
    %v172 = vshrl.u32 %v154, %v170
    %v173 = vor.u32 %v171, %v172
    %v174 = vsub.s32 4294967266, %v169
    %v175 = vadd.s32 %v174, 127
    %v176 = vshll.u32 %v175, 23
    %v177 = vor.u32 4788187, %v176
    %v178 = vand.u32 2147483647, %v177
    %v180 = vcvt.s32.f32 %v173
    %v181 = vmul.f32 %v180, %v178
    %v182 = vxor.u32 %v181, 2147483648
    %v183 = vsel %vm62, %v182, %v181
    %v184 = vsub.s32 4, %v160
    %v185 = vsel %vm62, %v184, %v160
    %v186 = vsel %vm61, %v59, %v183
    %v187 = vsel %vm61, 0, %v185
    %v188 = vmul.f32 %v186, %v186
    %v189 = vmul.f32 %v188, -0.001358992
    %v190 = vadd.f32 %v189, 0.041655596
    %v191 = vmul.f32 %v188, %v190
    %v192 = vadd.f32 %v191, -0.4999988
    %v193 = vmul.f32 %v188, %v192
    %v194 = vadd.f32 1.0, %v193
    %v195 = vmul.f32 %v186, %v186
    %v196 = vmul.f32 %v195, -0.00019511016
    %v197 = vadd.f32 %v196, 0.008332121
    %v198 = vmul.f32 %v195, %v197
    %v199 = vadd.f32 %v198, -0.16666654
    %v200 = vmul.f32 %v195, %v199
    %v201 = vadd.f32 %v200, 1.0
    %v202 = vmul.f32 %v201, %v186
    %vm203 = vweird.f32 %v59
    %v204 = vadd.s32 %v187, 3
    %v205 = vand.u32 %v204, 3
    %vm206 = vcmp.lt.s32.totalorder %v205, 2
    %vm207 = vcmp.eq.s32.totalorder %v205, 0
    %v208 = vxor.u32 %v202, 2147483648
    %v209 = vsel %vm207, %v194, %v208
    %vm210 = vcmp.eq.s32.totalorder %v205, 2
    %v211 = vxor.u32 %v194, 2147483648
    %v212 = vsel %vm210, %v211, %v202
    %v213 = vsel %vm206, %v209, %v212
    %v214 = vsel %vm203, nan, %v213
    %v215 = vstv %s54
    %v216 = vmul.f32 %v215, %v214
    %v217 = vadd.f32 %v52, %v216
    %s218 = sld [smem:[#allocation3 + $0x1]]
    %s219 = sld [smem:[#allocation3 + $0x81]]
    %s220 = sld [smem:[#allocation3 + $0x101]]
    %v221 = vstv %s218
    %v222 = vmul.f32 %v41, %v221
    %v223 = vstv %s220
    %v224 = vsub.f32 %v223, %v222
    %v225 = vand.u32 2147483647, %v224
    %vm226 = vcmp.le.f32.partialorder %v225, 0.7853982
    %vm227 = vcmp.lt.s32.totalorder %v224, 0
    %v228 = vand.u32 %v224, 2139095040
    %v229 = vshrl.u32 %v228, 23
    %v230 = vsub.s32 %v229, 127
    %v231 = vand.u32 2147483647, %v224
    %v232 = vand.u32 %v231, 8388607
    %v233 = vor.u32 %v232, 8388608
    %v234 = vsub.s32 0, %v233
    %v235 = vadd.s32 %v230, 1
    %vm236 = vcmp.gt.s32.totalorder %v235, 0
    %v237 = vsel %vm236, %v235, 0
    %v238 = vshrl.u32 %v237, 5
    %v239 = vand.u32 %v237, 31
    %v240 = vsub.s32 32, %v239
    %v241 = vshrl.u32 683565275, %v240
    %v242 = vshll.u32 683565275, %v239
    %v243 = vshrl.u32 2475754826, %v240
    %v244 = vor.u32 %v242, %v243
    %v245 = vshll.u32 2475754826, %v239
    %v246 = vshrl.u32 2131351028, %v240
    %v247 = vor.u32 %v245, %v246
    %v248 = vshll.u32 2131351028, %v239
    %v249 = vshrl.u32 2102212464, %v240
    %v250 = vor.u32 %v248, %v249
    %v251 = vshll.u32 2102212464, %v239
    %v252 = vshrl.u32 920167782, %v240
    %v253 = vor.u32 %v251, %v252
    %v254 = vshll.u32 920167782, %v239
    %v255 = vshrl.u32 1326507024, %v240
    %v256 = vor.u32 %v254, %v255
    %vm257 = vcmp.lt.s32.totalorder %v238, 1
    %vm258 = vcmp.lt.s32.totalorder %v238, 2
    %vm259 = vcmp.lt.s32.totalorder %v238, 3
    %vm260 = vcmp.lt.s32.totalorder %v238, 4
    %v261 = vsel %vm257, %v241, %v244
    %v262 = vsel %vm260, %v250, 2102212464
    %v263 = vsel %vm259, %v247, %v262
    %v264 = vsel %vm258, %v261, %v263
    %v265 = vsel %vm257, %v244, %v247
    %v266 = vsel %vm260, %v253, 920167782
    %v267 = vsel %vm259, %v250, %v266
    %v268 = vsel %vm258, %v265, %v267
    %v269 = vsel %vm257, %v247, %v250
    %v270 = vsel %vm260, %v256, 1326507024
    %v271 = vsel %vm259, %v253, %v270
    %v272 = vsel %vm258, %v269, %v271
    %v273 = vshll.u32 %v233, 8
    %v274 = vand.u32 %v273, 65535
    %v275 = vshrl.u32 %v273, 16
    %v276 = vand.u32 %v272, 65535
    %v277 = vshrl.u32 %v272, 16
    %v278 = vmul.u32 %v274, %v276
    %v279 = vmul.u32 %v274, %v277
    %v280 = vmul.u32 %v275, %v276
    %v281 = vmul.u32 %v275, %v277
    %v282 = vshll.u32 %v279, 16
    %v283 = vshrl.u32 %v279, 16
    %v284 = vshll.u32 %v280, 16
    %v285 = vshrl.u32 %v280, 16
    %vm286 = vc.u32 %v278, %v282
    %v287 = vsel %vm286, 1, 0
    %v288 = vadd.s32 %v278, %v282
    %v289 = vadd.s32 %v281, %v287
    %vm290 = vc.u32 %v288, %v284
    %v291 = vsel %vm290, 1, 0
    %v292 = vadd.s32 %v288, %v284
    %v293 = vadd.s32 %v289, %v291
    %v294 = vadd.s32 %v293, %v283
    %v295 = vadd.s32 %v294, %v285
    %v296 = vand.u32 %v273, 65535
    %v297 = vshrl.u32 %v273, 16
    %v298 = vand.u32 %v268, 65535
    %v299 = vshrl.u32 %v268, 16
    %v300 = vmul.u32 %v296, %v298
    %v301 = vmul.u32 %v296, %v299
    %v302 = vmul.u32 %v297, %v298
    %v303 = vmul.u32 %v297, %v299
    %v304 = vshll.u32 %v301, 16
    %v305 = vshrl.u32 %v301, 16
    %v306 = vshll.u32 %v302, 16
    %v307 = vshrl.u32 %v302, 16
    %vm308 = vc.u32 %v300, %v304
    %v309 = vsel %vm308, 1, 0
    %v310 = vadd.s32 %v300, %v304
    %v311 = vadd.s32 %v303, %v309
    %vm312 = vc.u32 %v310, %v306
    %v313 = vsel %vm312, 1, 0
    %v314 = vadd.s32 %v310, %v306
    %v315 = vadd.s32 %v311, %v313
    %v316 = vadd.s32 %v315, %v305
    %v317 = vadd.s32 %v316, %v307
    %v318 = vmul.u32 %v273, %v264
    %v319 = vadd.s32 %v295, %v314
    %vm320 = vc.u32 %v295, %v314
    %v321 = vadd.s32 %v317, 1
    %v322 = vsel %vm320, %v321, %v317
    %v323 = vadd.s32 %v318, %v322
    %v324 = vadd.s32 %v323, 536870912
    %v325 = vshrl.u32 %v324, 30
    %v326 = vshll.u32 %v325, 30
    %v327 = vsub.s32 %v323, %v326
    %vm328 = vcmp.lt.s32.totalorder %v327, 0
    %v329 = vsub.s32 0, %v327
    %v330 = vsel %vm328, %v329, %v327
    %v331 = vclz %v330
    %v332 = vsub.s32 %v331, 2
    %vm333 = vcmp.gt.s32.totalorder 0, %v332
    %v334 = vsel %vm333, 0, %v332
    %v335 = vsub.s32 32, %v334
    %v336 = vshll.u32 %v327, %v334
    %v337 = vshrl.u32 %v319, %v335
    %v338 = vor.u32 %v336, %v337
    %v339 = vsub.s32 4294967266, %v334
    %v340 = vadd.s32 %v339, 127
    %v341 = vshll.u32 %v340, 23
    %v342 = vor.u32 4788187, %v341
    %v343 = vand.u32 2147483647, %v342
    %v345 = vcvt.s32.f32 %v338
    %v346 = vmul.f32 %v345, %v343
    %v347 = vxor.u32 %v346, 2147483648
    %v348 = vsel %vm227, %v347, %v346
    %v349 = vsub.s32 4, %v325
    %v350 = vsel %vm227, %v349, %v325
    %v351 = vsel %vm226, %v224, %v348
    %v352 = vsel %vm226, 0, %v350
    %v353 = vmul.f32 %v351, %v351
    %v354 = vmul.f32 %v353, -0.001358992
    %v355 = vadd.f32 %v354, 0.041655596
    %v356 = vmul.f32 %v353, %v355
    %v357 = vadd.f32 %v356, -0.4999988
    %v358 = vmul.f32 %v353, %v357
    %v359 = vadd.f32 1.0, %v358
    %v360 = vmul.f32 %v351, %v351
    %v361 = vmul.f32 %v360, -0.00019511016
    %v362 = vadd.f32 %v361, 0.008332121
    %v363 = vmul.f32 %v360, %v362
    %v364 = vadd.f32 %v363, -0.16666654
    %v365 = vmul.f32 %v360, %v364
    %v366 = vadd.f32 %v365, 1.0
    %v367 = vmul.f32 %v366, %v351
    %vm368 = vweird.f32 %v224
    %v369 = vadd.s32 %v352, 3
    %v370 = vand.u32 %v369, 3
    %vm371 = vcmp.lt.s32.totalorder %v370, 2
    %vm372 = vcmp.eq.s32.totalorder %v370, 0
    %v373 = vxor.u32 %v367, 2147483648
    %v374 = vsel %vm372, %v359, %v373
    %vm375 = vcmp.eq.s32.totalorder %v370, 2
    %v376 = vxor.u32 %v359, 2147483648
    %v377 = vsel %vm375, %v376, %v367
    %v378 = vsel %vm371, %v374, %v377
    %v379 = vsel %vm368, nan, %v378
    %v380 = vstv %s219
    %v381 = vmul.f32 %v380, %v379
    %v382 = vadd.f32 %v217, %v381
    %s383 = sld [smem:[#allocation3 + $0x2]]
    %s384 = sld [smem:[#allocation3 + $0x82]]
    %s385 = sld [smem:[#allocation3 + $0x102]]
    %v386 = vstv %s383
    %v387 = vmul.f32 %v41, %v386
    %v388 = vstv %s385
    %v389 = vsub.f32 %v388, %v387
    %v390 = vand.u32 2147483647, %v389
    %vm391 = vcmp.le.f32.partialorder %v390, 0.7853982
    %vm392 = vcmp.lt.s32.totalorder %v389, 0
    %v393 = vand.u32 %v389, 2139095040
    %v394 = vshrl.u32 %v393, 23
    %v395 = vsub.s32 %v394, 127
    %v396 = vand.u32 2147483647, %v389
    %v397 = vand.u32 %v396, 8388607
    %v398 = vor.u32 %v397, 8388608
    %v399 = vsub.s32 0, %v398
    %v400 = vadd.s32 %v395, 1
    %vm401 = vcmp.gt.s32.totalorder %v400, 0
    %v402 = vsel %vm401, %v400, 0
    %v403 = vshrl.u32 %v402, 5
    %v404 = vand.u32 %v402, 31
    %v405 = vsub.s32 32, %v404
    %v406 = vshrl.u32 683565275, %v405
    %v407 = vshll.u32 683565275, %v404
    %v408 = vshrl.u32 2475754826, %v405
    %v409 = vor.u32 %v407, %v408
    %v410 = vshll.u32 2475754826, %v404
    %v411 = vshrl.u32 2131351028, %v405
    %v412 = vor.u32 %v410, %v411
    %v413 = vshll.u32 2131351028, %v404
    %v414 = vshrl.u32 2102212464, %v405
    %v415 = vor.u32 %v413, %v414
    %v416 = vshll.u32 2102212464, %v404
    %v417 = vshrl.u32 920167782, %v405
    %v418 = vor.u32 %v416, %v417
    %v419 = vshll.u32 920167782, %v404
    %v420 = vshrl.u32 1326507024, %v405
    %v421 = vor.u32 %v419, %v420
    %vm422 = vcmp.lt.s32.totalorder %v403, 1
    %vm423 = vcmp.lt.s32.totalorder %v403, 2
    %vm424 = vcmp.lt.s32.totalorder %v403, 3
    %vm425 = vcmp.lt.s32.totalorder %v403, 4
    %v426 = vsel %vm422, %v406, %v409
    %v427 = vsel %vm425, %v415, 2102212464
    %v428 = vsel %vm424, %v412, %v427
    %v429 = vsel %vm423, %v426, %v428
    %v430 = vsel %vm422, %v409, %v412
    %v431 = vsel %vm425, %v418, 920167782
    %v432 = vsel %vm424, %v415, %v431
    %v433 = vsel %vm423, %v430, %v432
    %v434 = vsel %vm422, %v412, %v415
    %v435 = vsel %vm425, %v421, 1326507024
    %v436 = vsel %vm424, %v418, %v435
    %v437 = vsel %vm423, %v434, %v436
    %v438 = vshll.u32 %v398, 8
    %v439 = vand.u32 %v438, 65535
    %v440 = vshrl.u32 %v438, 16
    %v441 = vand.u32 %v437, 65535
    %v442 = vshrl.u32 %v437, 16
    %v443 = vmul.u32 %v439, %v441
    %v444 = vmul.u32 %v439, %v442
    %v445 = vmul.u32 %v440, %v441
    %v446 = vmul.u32 %v440, %v442
    %v447 = vshll.u32 %v444, 16
    %v448 = vshrl.u32 %v444, 16
    %v449 = vshll.u32 %v445, 16
    %v450 = vshrl.u32 %v445, 16
    %vm451 = vc.u32 %v443, %v447
    %v452 = vsel %vm451, 1, 0
    %v453 = vadd.s32 %v443, %v447
    %v454 = vadd.s32 %v446, %v452
    %vm455 = vc.u32 %v453, %v449
    %v456 = vsel %vm455, 1, 0
    %v457 = vadd.s32 %v453, %v449
    %v458 = vadd.s32 %v454, %v456
    %v459 = vadd.s32 %v458, %v448
    %v460 = vadd.s32 %v459, %v450
    %v461 = vand.u32 %v438, 65535
    %v462 = vshrl.u32 %v438, 16
    %v463 = vand.u32 %v433, 65535
    %v464 = vshrl.u32 %v433, 16
    %v465 = vmul.u32 %v461, %v463
    %v466 = vmul.u32 %v461, %v464
    %v467 = vmul.u32 %v462, %v463
    %v468 = vmul.u32 %v462, %v464
    %v469 = vshll.u32 %v466, 16
    %v470 = vshrl.u32 %v466, 16
    %v471 = vshll.u32 %v467, 16
    %v472 = vshrl.u32 %v467, 16
    %vm473 = vc.u32 %v465, %v469
    %v474 = vsel %vm473, 1, 0
    %v475 = vadd.s32 %v465, %v469
    %v476 = vadd.s32 %v468, %v474
    %vm477 = vc.u32 %v475, %v471
    %v478 = vsel %vm477, 1, 0
    %v479 = vadd.s32 %v475, %v471
    %v480 = vadd.s32 %v476, %v478
    %v481 = vadd.s32 %v480, %v470
    %v482 = vadd.s32 %v481, %v472
    %v483 = vmul.u32 %v438, %v429
    %v484 = vadd.s32 %v460, %v479
    %vm485 = vc.u32 %v460, %v479
    %v486 = vadd.s32 %v482, 1
    %v487 = vsel %vm485, %v486, %v482
    %v488 = vadd.s32 %v483, %v487
    %v489 = vadd.s32 %v488, 536870912
    %v490 = vshrl.u32 %v489, 30
    %v491 = vshll.u32 %v490, 30
    %v492 = vsub.s32 %v488, %v491
    %vm493 = vcmp.lt.s32.totalorder %v492, 0
    %v494 = vsub.s32 0, %v492
    %v495 = vsel %vm493, %v494, %v492
    %v496 = vclz %v495
    %v497 = vsub.s32 %v496, 2
    %vm498 = vcmp.gt.s32.totalorder 0, %v497
    %v499 = vsel %vm498, 0, %v497
    %v500 = vsub.s32 32, %v499
    %v501 = vshll.u32 %v492, %v499
    %v502 = vshrl.u32 %v484, %v500
    %v503 = vor.u32 %v501, %v502
    %v504 = vsub.s32 4294967266, %v499
    %v505 = vadd.s32 %v504, 127
    %v506 = vshll.u32 %v505, 23
    %v507 = vor.u32 4788187, %v506
    %v508 = vand.u32 2147483647, %v507
    %v510 = vcvt.s32.f32 %v503
    %v511 = vmul.f32 %v510, %v508
    %v512 = vxor.u32 %v511, 2147483648
    %v513 = vsel %vm392, %v512, %v511
    %v514 = vsub.s32 4, %v490
    %v515 = vsel %vm392, %v514, %v490
    %v516 = vsel %vm391, %v389, %v513
    %v517 = vsel %vm391, 0, %v515
    %v518 = vmul.f32 %v516, %v516
    %v519 = vmul.f32 %v518, -0.001358992
    %v520 = vadd.f32 %v519, 0.041655596
    %v521 = vmul.f32 %v518, %v520
    %v522 = vadd.f32 %v521, -0.4999988
    %v523 = vmul.f32 %v518, %v522
    %v524 = vadd.f32 1.0, %v523
    %v525 = vmul.f32 %v516, %v516
    %v526 = vmul.f32 %v525, -0.00019511016
    %v527 = vadd.f32 %v526, 0.008332121
    %v528 = vmul.f32 %v525, %v527
    %v529 = vadd.f32 %v528, -0.16666654
    %v530 = vmul.f32 %v525, %v529
    %v531 = vadd.f32 %v530, 1.0
    %v532 = vmul.f32 %v531, %v516
    %vm533 = vweird.f32 %v389
    %v534 = vadd.s32 %v517, 3
    %v535 = vand.u32 %v534, 3
    %vm536 = vcmp.lt.s32.totalorder %v535, 2
    %vm537 = vcmp.eq.s32.totalorder %v535, 0
    %v538 = vxor.u32 %v532, 2147483648
    %v539 = vsel %vm537, %v524, %v538
    %vm540 = vcmp.eq.s32.totalorder %v535, 2
    %v541 = vxor.u32 %v524, 2147483648
    %v542 = vsel %vm540, %v541, %v532
    %v543 = vsel %vm536, %v539, %v542
    %v544 = vsel %vm533, nan, %v543
    %v545 = vstv %s384
    %v546 = vmul.f32 %v545, %v544
    %v547 = vadd.f32 %v382, %v546
    %s548 = sld [smem:[#allocation3 + $0x3]]
    %s549 = sld [smem:[#allocation3 + $0x83]]
    %s550 = sld [smem:[#allocation3 + $0x103]]
    %v551 = vstv %s548
    %v552 = vmul.f32 %v41, %v551
    %v553 = vstv %s550
    %v554 = vsub.f32 %v553, %v552
    %v555 = vand.u32 2147483647, %v554
    %vm556 = vcmp.le.f32.partialorder %v555, 0.7853982
    %vm557 = vcmp.lt.s32.totalorder %v554, 0
    %v558 = vand.u32 %v554, 2139095040
    %v559 = vshrl.u32 %v558, 23
    %v560 = vsub.s32 %v559, 127
    %v561 = vand.u32 2147483647, %v554
    %v562 = vand.u32 %v561, 8388607
    %v563 = vor.u32 %v562, 8388608
    %v564 = vsub.s32 0, %v563
    %v565 = vadd.s32 %v560, 1
    %vm566 = vcmp.gt.s32.totalorder %v565, 0
    %v567 = vsel %vm566, %v565, 0
    %v568 = vshrl.u32 %v567, 5
    %v569 = vand.u32 %v567, 31
    %v570 = vsub.s32 32, %v569
    %v571 = vshrl.u32 683565275, %v570
    %v572 = vshll.u32 683565275, %v569
    %v573 = vshrl.u32 2475754826, %v570
    %v574 = vor.u32 %v572, %v573
    %v575 = vshll.u32 2475754826, %v569
    %v576 = vshrl.u32 2131351028, %v570
    %v577 = vor.u32 %v575, %v576
    %v578 = vshll.u32 2131351028, %v569
    %v579 = vshrl.u32 2102212464, %v570
    %v580 = vor.u32 %v578, %v579
    %v581 = vshll.u32 2102212464, %v569
    %v582 = vshrl.u32 920167782, %v570
    %v583 = vor.u32 %v581, %v582
    %v584 = vshll.u32 920167782, %v569
    %v585 = vshrl.u32 1326507024, %v570
    %v586 = vor.u32 %v584, %v585
    %vm587 = vcmp.lt.s32.totalorder %v568, 1
    %vm588 = vcmp.lt.s32.totalorder %v568, 2
    %vm589 = vcmp.lt.s32.totalorder %v568, 3
    %vm590 = vcmp.lt.s32.totalorder %v568, 4
    %v591 = vsel %vm587, %v571, %v574
    %v592 = vsel %vm590, %v580, 2102212464
    %v593 = vsel %vm589, %v577, %v592
    %v594 = vsel %vm588, %v591, %v593
    %v595 = vsel %vm587, %v574, %v577
    %v596 = vsel %vm590, %v583, 920167782
    %v597 = vsel %vm589, %v580, %v596
    %v598 = vsel %vm588, %v595, %v597
    %v599 = vsel %vm587, %v577, %v580
    %v600 = vsel %vm590, %v586, 1326507024
    %v601 = vsel %vm589, %v583, %v600
    %v602 = vsel %vm588, %v599, %v601
    %v603 = vshll.u32 %v563, 8
    %v604 = vand.u32 %v603, 65535
    %v605 = vshrl.u32 %v603, 16
    %v606 = vand.u32 %v602, 65535
    %v607 = vshrl.u32 %v602, 16
    %v608 = vmul.u32 %v604, %v606
    %v609 = vmul.u32 %v604, %v607
    %v610 = vmul.u32 %v605, %v606
    %v611 = vmul.u32 %v605, %v607
    %v612 = vshll.u32 %v609, 16
    %v613 = vshrl.u32 %v609, 16
    %v614 = vshll.u32 %v610, 16
    %v615 = vshrl.u32 %v610, 16
    %vm616 = vc.u32 %v608, %v612
    %v617 = vsel %vm616, 1, 0
    %v618 = vadd.s32 %v608, %v612
    %v619 = vadd.s32 %v611, %v617
    %vm620 = vc.u32 %v618, %v614
    %v621 = vsel %vm620, 1, 0
    %v622 = vadd.s32 %v618, %v614
    %v623 = vadd.s32 %v619, %v621
    %v624 = vadd.s32 %v623, %v613
    %v625 = vadd.s32 %v624, %v615
    %v626 = vand.u32 %v603, 65535
    %v627 = vshrl.u32 %v603, 16
    %v628 = vand.u32 %v598, 65535
    %v629 = vshrl.u32 %v598, 16
    %v630 = vmul.u32 %v626, %v628
    %v631 = vmul.u32 %v626, %v629
    %v632 = vmul.u32 %v627, %v628
    %v633 = vmul.u32 %v627, %v629
    %v634 = vshll.u32 %v631, 16
    %v635 = vshrl.u32 %v631, 16
    %v636 = vshll.u32 %v632, 16
    %v637 = vshrl.u32 %v632, 16
    %vm638 = vc.u32 %v630, %v634
    %v639 = vsel %vm638, 1, 0
    %v640 = vadd.s32 %v630, %v634
    %v641 = vadd.s32 %v633, %v639
    %vm642 = vc.u32 %v640, %v636
    %v643 = vsel %vm642, 1, 0
    %v644 = vadd.s32 %v640, %v636
    %v645 = vadd.s32 %v641, %v643
    %v646 = vadd.s32 %v645, %v635
    %v647 = vadd.s32 %v646, %v637
    %v648 = vmul.u32 %v603, %v594
    %v649 = vadd.s32 %v625, %v644
    %vm650 = vc.u32 %v625, %v644
    %v651 = vadd.s32 %v647, 1
    %v652 = vsel %vm650, %v651, %v647
    %v653 = vadd.s32 %v648, %v652
    %v654 = vadd.s32 %v653, 536870912
    %v655 = vshrl.u32 %v654, 30
    %v656 = vshll.u32 %v655, 30
    %v657 = vsub.s32 %v653, %v656
    %vm658 = vcmp.lt.s32.totalorder %v657, 0
    %v659 = vsub.s32 0, %v657
    %v660 = vsel %vm658, %v659, %v657
    %v661 = vclz %v660
    %v662 = vsub.s32 %v661, 2
    %vm663 = vcmp.gt.s32.totalorder 0, %v662
    %v664 = vsel %vm663, 0, %v662
    %v665 = vsub.s32 32, %v664
    %v666 = vshll.u32 %v657, %v664
    %v667 = vshrl.u32 %v649, %v665
    %v668 = vor.u32 %v666, %v667
    %v669 = vsub.s32 4294967266, %v664
    %v670 = vadd.s32 %v669, 127
    %v671 = vshll.u32 %v670, 23
    %v672 = vor.u32 4788187, %v671
    %v673 = vand.u32 2147483647, %v672
    %v675 = vcvt.s32.f32 %v668
    %v676 = vmul.f32 %v675, %v673
    %v677 = vxor.u32 %v676, 2147483648
    %v678 = vsel %vm557, %v677, %v676
    %v679 = vsub.s32 4, %v655
    %v680 = vsel %vm557, %v679, %v655
    %v681 = vsel %vm556, %v554, %v678
    %v682 = vsel %vm556, 0, %v680
    %v683 = vmul.f32 %v681, %v681
    %v684 = vmul.f32 %v683, -0.001358992
    %v685 = vadd.f32 %v684, 0.041655596
    %v686 = vmul.f32 %v683, %v685
    %v687 = vadd.f32 %v686, -0.4999988
    %v688 = vmul.f32 %v683, %v687
    %v689 = vadd.f32 1.0, %v688
    %v690 = vmul.f32 %v681, %v681
    %v691 = vmul.f32 %v690, -0.00019511016
    %v692 = vadd.f32 %v691, 0.008332121
    %v693 = vmul.f32 %v690, %v692
    %v694 = vadd.f32 %v693, -0.16666654
    %v695 = vmul.f32 %v690, %v694
    %v696 = vadd.f32 %v695, 1.0
    %v697 = vmul.f32 %v696, %v681
    %vm698 = vweird.f32 %v554
    %v699 = vadd.s32 %v682, 3
    %v700 = vand.u32 %v699, 3
    %vm701 = vcmp.lt.s32.totalorder %v700, 2
    %vm702 = vcmp.eq.s32.totalorder %v700, 0
    %v703 = vxor.u32 %v697, 2147483648
    %v704 = vsel %vm702, %v689, %v703
    %vm705 = vcmp.eq.s32.totalorder %v700, 2
    %v706 = vxor.u32 %v689, 2147483648
    %v707 = vsel %vm705, %v706, %v697
    %v708 = vsel %vm701, %v704, %v707
    %v709 = vsel %vm698, nan, %v708
    %v710 = vstv %s549
    %v711 = vmul.f32 %v710, %v709
    %v712 = vadd.f32 %v547, %v711
    %s713 = sld [smem:[#allocation3 + $0x4]]
    %s714 = sld [smem:[#allocation3 + $0x84]]
    %s715 = sld [smem:[#allocation3 + $0x104]]
    %v716 = vstv %s713
    %v717 = vmul.f32 %v41, %v716
    %v718 = vstv %s715
    %v719 = vsub.f32 %v718, %v717
    %v720 = vand.u32 2147483647, %v719
    %vm721 = vcmp.le.f32.partialorder %v720, 0.7853982
    %vm722 = vcmp.lt.s32.totalorder %v719, 0
    %v723 = vand.u32 %v719, 2139095040
    %v724 = vshrl.u32 %v723, 23
    %v725 = vsub.s32 %v724, 127
    %v726 = vand.u32 2147483647, %v719
    %v727 = vand.u32 %v726, 8388607
    %v728 = vor.u32 %v727, 8388608
    %v729 = vsub.s32 0, %v728
    %v730 = vadd.s32 %v725, 1
    %vm731 = vcmp.gt.s32.totalorder %v730, 0
    %v732 = vsel %vm731, %v730, 0
    %v733 = vshrl.u32 %v732, 5
    %v734 = vand.u32 %v732, 31
    %v735 = vsub.s32 32, %v734
    %v736 = vshrl.u32 683565275, %v735
    %v737 = vshll.u32 683565275, %v734
    %v738 = vshrl.u32 2475754826, %v735
    %v739 = vor.u32 %v737, %v738
    %v740 = vshll.u32 2475754826, %v734
    %v741 = vshrl.u32 2131351028, %v735
    %v742 = vor.u32 %v740, %v741
    %v743 = vshll.u32 2131351028, %v734
    %v744 = vshrl.u32 2102212464, %v735
    %v745 = vor.u32 %v743, %v744
    %v746 = vshll.u32 2102212464, %v734
    %v747 = vshrl.u32 920167782, %v735
    %v748 = vor.u32 %v746, %v747
    %v749 = vshll.u32 920167782, %v734
    %v750 = vshrl.u32 1326507024, %v735
    %v751 = vor.u32 %v749, %v750
    %vm752 = vcmp.lt.s32.totalorder %v733, 1
    %vm753 = vcmp.lt.s32.totalorder %v733, 2
    %vm754 = vcmp.lt.s32.totalorder %v733, 3
    %vm755 = vcmp.lt.s32.totalorder %v733, 4
    %v756 = vsel %vm752, %v736, %v739
    %v757 = vsel %vm755, %v745, 2102212464
    %v758 = vsel %vm754, %v742, %v757
    %v759 = vsel %vm753, %v756, %v758
    %v760 = vsel %vm752, %v739, %v742
    %v761 = vsel %vm755, %v748, 920167782
    %v762 = vsel %vm754, %v745, %v761
    %v763 = vsel %vm753, %v760, %v762
    %v764 = vsel %vm752, %v742, %v745
    %v765 = vsel %vm755, %v751, 1326507024
    %v766 = vsel %vm754, %v748, %v765
    %v767 = vsel %vm753, %v764, %v766
    %v768 = vshll.u32 %v728, 8
    %v769 = vand.u32 %v768, 65535
    %v770 = vshrl.u32 %v768, 16
    %v771 = vand.u32 %v767, 65535
    %v772 = vshrl.u32 %v767, 16
    %v773 = vmul.u32 %v769, %v771
    %v774 = vmul.u32 %v769, %v772
    %v775 = vmul.u32 %v770, %v771
    %v776 = vmul.u32 %v770, %v772
    %v777 = vshll.u32 %v774, 16
    %v778 = vshrl.u32 %v774, 16
    %v779 = vshll.u32 %v775, 16
    %v780 = vshrl.u32 %v775, 16
    %vm781 = vc.u32 %v773, %v777
    %v782 = vsel %vm781, 1, 0
    %v783 = vadd.s32 %v773, %v777
    %v784 = vadd.s32 %v776, %v782
    %vm785 = vc.u32 %v783, %v779
    %v786 = vsel %vm785, 1, 0
    %v787 = vadd.s32 %v783, %v779
    %v788 = vadd.s32 %v784, %v786
    %v789 = vadd.s32 %v788, %v778
    %v790 = vadd.s32 %v789, %v780
    %v791 = vand.u32 %v768, 65535
    %v792 = vshrl.u32 %v768, 16
    %v793 = vand.u32 %v763, 65535
    %v794 = vshrl.u32 %v763, 16
    %v795 = vmul.u32 %v791, %v793
    %v796 = vmul.u32 %v791, %v794
    %v797 = vmul.u32 %v792, %v793
    %v798 = vmul.u32 %v792, %v794
    %v799 = vshll.u32 %v796, 16
    %v800 = vshrl.u32 %v796, 16
    %v801 = vshll.u32 %v797, 16
    %v802 = vshrl.u32 %v797, 16
    %vm803 = vc.u32 %v795, %v799
    %v804 = vsel %vm803, 1, 0
    %v805 = vadd.s32 %v795, %v799
    %v806 = vadd.s32 %v798, %v804
    %vm807 = vc.u32 %v805, %v801
    %v808 = vsel %vm807, 1, 0
    %v809 = vadd.s32 %v805, %v801
    %v810 = vadd.s32 %v806, %v808
    %v811 = vadd.s32 %v810, %v800
    %v812 = vadd.s32 %v811, %v802
    %v813 = vmul.u32 %v768, %v759
    %v814 = vadd.s32 %v790, %v809
    %vm815 = vc.u32 %v790, %v809
    %v816 = vadd.s32 %v812, 1
    %v817 = vsel %vm815, %v816, %v812
    %v818 = vadd.s32 %v813, %v817
    %v819 = vadd.s32 %v818, 536870912
    %v820 = vshrl.u32 %v819, 30
    %v821 = vshll.u32 %v820, 30
    %v822 = vsub.s32 %v818, %v821
    %vm823 = vcmp.lt.s32.totalorder %v822, 0
    %v824 = vsub.s32 0, %v822
    %v825 = vsel %vm823, %v824, %v822
    %v826 = vclz %v825
    %v827 = vsub.s32 %v826, 2
    %vm828 = vcmp.gt.s32.totalorder 0, %v827
    %v829 = vsel %vm828, 0, %v827
    %v830 = vsub.s32 32, %v829
    %v831 = vshll.u32 %v822, %v829
    %v832 = vshrl.u32 %v814, %v830
    %v833 = vor.u32 %v831, %v832
    %v834 = vsub.s32 4294967266, %v829
    %v835 = vadd.s32 %v834, 127
    %v836 = vshll.u32 %v835, 23
    %v837 = vor.u32 4788187, %v836
    %v838 = vand.u32 2147483647, %v837
    %v840 = vcvt.s32.f32 %v833
    %v841 = vmul.f32 %v840, %v838
    %v842 = vxor.u32 %v841, 2147483648
    %v843 = vsel %vm722, %v842, %v841
    %v844 = vsub.s32 4, %v820
    %v845 = vsel %vm722, %v844, %v820
    %v846 = vsel %vm721, %v719, %v843
    %v847 = vsel %vm721, 0, %v845
    %v848 = vmul.f32 %v846, %v846
    %v849 = vmul.f32 %v848, -0.001358992
    %v850 = vadd.f32 %v849, 0.041655596
    %v851 = vmul.f32 %v848, %v850
    %v852 = vadd.f32 %v851, -0.4999988
    %v853 = vmul.f32 %v848, %v852
    %v854 = vadd.f32 1.0, %v853
    %v855 = vmul.f32 %v846, %v846
    %v856 = vmul.f32 %v855, -0.00019511016
    %v857 = vadd.f32 %v856, 0.008332121
    %v858 = vmul.f32 %v855, %v857
    %v859 = vadd.f32 %v858, -0.16666654
    %v860 = vmul.f32 %v855, %v859
    %v861 = vadd.f32 %v860, 1.0
    %v862 = vmul.f32 %v861, %v846
    %vm863 = vweird.f32 %v719
    %v864 = vadd.s32 %v847, 3
    %v865 = vand.u32 %v864, 3
    %vm866 = vcmp.lt.s32.totalorder %v865, 2
    %vm867 = vcmp.eq.s32.totalorder %v865, 0
    %v868 = vxor.u32 %v862, 2147483648
    %v869 = vsel %vm867, %v854, %v868
    %vm870 = vcmp.eq.s32.totalorder %v865, 2
    %v871 = vxor.u32 %v854, 2147483648
    %v872 = vsel %vm870, %v871, %v862
    %v873 = vsel %vm866, %v869, %v872
    %v874 = vsel %vm863, nan, %v873
    %v875 = vstv %s714
    %v876 = vmul.f32 %v875, %v874
    %v877 = vadd.f32 %v712, %v876
    %s878 = sld [smem:[#allocation3 + $0x5]]
    %s879 = sld [smem:[#allocation3 + $0x85]]
    %s880 = sld [smem:[#allocation3 + $0x105]]
    %v881 = vstv %s878
    %v882 = vmul.f32 %v41, %v881
    %v883 = vstv %s880
    %v884 = vsub.f32 %v883, %v882
    %v885 = vand.u32 2147483647, %v884
    %vm886 = vcmp.le.f32.partialorder %v885, 0.7853982
    %vm887 = vcmp.lt.s32.totalorder %v884, 0
    %v888 = vand.u32 %v884, 2139095040
    %v889 = vshrl.u32 %v888, 23
    %v890 = vsub.s32 %v889, 127
    %v891 = vand.u32 2147483647, %v884
    %v892 = vand.u32 %v891, 8388607
    %v893 = vor.u32 %v892, 8388608
    %v894 = vsub.s32 0, %v893
    %v895 = vadd.s32 %v890, 1
    %vm896 = vcmp.gt.s32.totalorder %v895, 0
    %v897 = vsel %vm896, %v895, 0
    %v898 = vshrl.u32 %v897, 5
    %v899 = vand.u32 %v897, 31
    %v900 = vsub.s32 32, %v899
    %v901 = vshrl.u32 683565275, %v900
    %v902 = vshll.u32 683565275, %v899
    %v903 = vshrl.u32 2475754826, %v900
    %v904 = vor.u32 %v902, %v903
    %v905 = vshll.u32 2475754826, %v899
    %v906 = vshrl.u32 2131351028, %v900
    %v907 = vor.u32 %v905, %v906
    %v908 = vshll.u32 2131351028, %v899
    %v909 = vshrl.u32 2102212464, %v900
    %v910 = vor.u32 %v908, %v909
    %v911 = vshll.u32 2102212464, %v899
    %v912 = vshrl.u32 920167782, %v900
    %v913 = vor.u32 %v911, %v912
    %v914 = vshll.u32 920167782, %v899
    %v915 = vshrl.u32 1326507024, %v900
    %v916 = vor.u32 %v914, %v915
    %vm917 = vcmp.lt.s32.totalorder %v898, 1
    %vm918 = vcmp.lt.s32.totalorder %v898, 2
    %vm919 = vcmp.lt.s32.totalorder %v898, 3
    %vm920 = vcmp.lt.s32.totalorder %v898, 4
    %v921 = vsel %vm917, %v901, %v904
    %v922 = vsel %vm920, %v910, 2102212464
    %v923 = vsel %vm919, %v907, %v922
    %v924 = vsel %vm918, %v921, %v923
    %v925 = vsel %vm917, %v904, %v907
    %v926 = vsel %vm920, %v913, 920167782
    %v927 = vsel %vm919, %v910, %v926
    %v928 = vsel %vm918, %v925, %v927
    %v929 = vsel %vm917, %v907, %v910
    %v930 = vsel %vm920, %v916, 1326507024
    %v931 = vsel %vm919, %v913, %v930
    %v932 = vsel %vm918, %v929, %v931
    %v933 = vshll.u32 %v893, 8
    %v934 = vand.u32 %v933, 65535
    %v935 = vshrl.u32 %v933, 16
    %v936 = vand.u32 %v932, 65535
    %v937 = vshrl.u32 %v932, 16
    %v938 = vmul.u32 %v934, %v936
    %v939 = vmul.u32 %v934, %v937
    %v940 = vmul.u32 %v935, %v936
    %v941 = vmul.u32 %v935, %v937
    %v942 = vshll.u32 %v939, 16
    %v943 = vshrl.u32 %v939, 16
    %v944 = vshll.u32 %v940, 16
    %v945 = vshrl.u32 %v940, 16
    %vm946 = vc.u32 %v938, %v942
    %v947 = vsel %vm946, 1, 0
    %v948 = vadd.s32 %v938, %v942
    %v949 = vadd.s32 %v941, %v947
    %vm950 = vc.u32 %v948, %v944
    %v951 = vsel %vm950, 1, 0
    %v952 = vadd.s32 %v948, %v944
    %v953 = vadd.s32 %v949, %v951
    %v954 = vadd.s32 %v953, %v943
    %v955 = vadd.s32 %v954, %v945
    %v956 = vand.u32 %v933, 65535
    %v957 = vshrl.u32 %v933, 16
    %v958 = vand.u32 %v928, 65535
    %v959 = vshrl.u32 %v928, 16
    %v960 = vmul.u32 %v956, %v958
    %v961 = vmul.u32 %v956, %v959
    %v962 = vmul.u32 %v957, %v958
    %v963 = vmul.u32 %v957, %v959
    %v964 = vshll.u32 %v961, 16
    %v965 = vshrl.u32 %v961, 16
    %v966 = vshll.u32 %v962, 16
    %v967 = vshrl.u32 %v962, 16
    %vm968 = vc.u32 %v960, %v964
    %v969 = vsel %vm968, 1, 0
    %v970 = vadd.s32 %v960, %v964
    %v971 = vadd.s32 %v963, %v969
    %vm972 = vc.u32 %v970, %v966
    %v973 = vsel %vm972, 1, 0
    %v974 = vadd.s32 %v970, %v966
    %v975 = vadd.s32 %v971, %v973
    %v976 = vadd.s32 %v975, %v965
    %v977 = vadd.s32 %v976, %v967
    %v978 = vmul.u32 %v933, %v924
    %v979 = vadd.s32 %v955, %v974
    %vm980 = vc.u32 %v955, %v974
    %v981 = vadd.s32 %v977, 1
    %v982 = vsel %vm980, %v981, %v977
    %v983 = vadd.s32 %v978, %v982
    %v984 = vadd.s32 %v983, 536870912
    %v985 = vshrl.u32 %v984, 30
    %v986 = vshll.u32 %v985, 30
    %v987 = vsub.s32 %v983, %v986
    %vm988 = vcmp.lt.s32.totalorder %v987, 0
    %v989 = vsub.s32 0, %v987
    %v990 = vsel %vm988, %v989, %v987
    %v991 = vclz %v990
    %v992 = vsub.s32 %v991, 2
    %vm993 = vcmp.gt.s32.totalorder 0, %v992
    %v994 = vsel %vm993, 0, %v992
    %v995 = vsub.s32 32, %v994
    %v996 = vshll.u32 %v987, %v994
    %v997 = vshrl.u32 %v979, %v995
    %v998 = vor.u32 %v996, %v997
    %v999 = vsub.s32 4294967266, %v994
    %v1000 = vadd.s32 %v999, 127
    %v1001 = vshll.u32 %v1000, 23
    %v1002 = vor.u32 4788187, %v1001
    %v1003 = vand.u32 2147483647, %v1002
    %v1005 = vcvt.s32.f32 %v998
    %v1006 = vmul.f32 %v1005, %v1003
    %v1007 = vxor.u32 %v1006, 2147483648
    %v1008 = vsel %vm887, %v1007, %v1006
    %v1009 = vsub.s32 4, %v985
    %v1010 = vsel %vm887, %v1009, %v985
    %v1011 = vsel %vm886, %v884, %v1008
    %v1012 = vsel %vm886, 0, %v1010
    %v1013 = vmul.f32 %v1011, %v1011
    %v1014 = vmul.f32 %v1013, -0.001358992
    %v1015 = vadd.f32 %v1014, 0.041655596
    %v1016 = vmul.f32 %v1013, %v1015
    %v1017 = vadd.f32 %v1016, -0.4999988
    %v1018 = vmul.f32 %v1013, %v1017
    %v1019 = vadd.f32 1.0, %v1018
    %v1020 = vmul.f32 %v1011, %v1011
    %v1021 = vmul.f32 %v1020, -0.00019511016
    %v1022 = vadd.f32 %v1021, 0.008332121
    %v1023 = vmul.f32 %v1020, %v1022
    %v1024 = vadd.f32 %v1023, -0.16666654
    %v1025 = vmul.f32 %v1020, %v1024
    %v1026 = vadd.f32 %v1025, 1.0
    %v1027 = vmul.f32 %v1026, %v1011
    %vm1028 = vweird.f32 %v884
    %v1029 = vadd.s32 %v1012, 3
    %v1030 = vand.u32 %v1029, 3
    %vm1031 = vcmp.lt.s32.totalorder %v1030, 2
    %vm1032 = vcmp.eq.s32.totalorder %v1030, 0
    %v1033 = vxor.u32 %v1027, 2147483648
    %v1034 = vsel %vm1032, %v1019, %v1033
    %vm1035 = vcmp.eq.s32.totalorder %v1030, 2
    %v1036 = vxor.u32 %v1019, 2147483648
    %v1037 = vsel %vm1035, %v1036, %v1027
    %v1038 = vsel %vm1031, %v1034, %v1037
    %v1039 = vsel %vm1028, nan, %v1038
    %v1040 = vstv %s879
    %v1041 = vmul.f32 %v1040, %v1039
    %v1042 = vadd.f32 %v877, %v1041
    %s1043 = sld [smem:[#allocation3 + $0x6]]
    %s1044 = sld [smem:[#allocation3 + $0x86]]
    %s1045 = sld [smem:[#allocation3 + $0x106]]
    %v1046 = vstv %s1043
    %v1047 = vmul.f32 %v41, %v1046
    %v1048 = vstv %s1045
    %v1049 = vsub.f32 %v1048, %v1047
    %v1050 = vand.u32 2147483647, %v1049
    %vm1051 = vcmp.le.f32.partialorder %v1050, 0.7853982
    %vm1052 = vcmp.lt.s32.totalorder %v1049, 0
    %v1053 = vand.u32 %v1049, 2139095040
    %v1054 = vshrl.u32 %v1053, 23
    %v1055 = vsub.s32 %v1054, 127
    %v1056 = vand.u32 2147483647, %v1049
    %v1057 = vand.u32 %v1056, 8388607
    %v1058 = vor.u32 %v1057, 8388608
    %v1059 = vsub.s32 0, %v1058
    %v1060 = vadd.s32 %v1055, 1
    %vm1061 = vcmp.gt.s32.totalorder %v1060, 0
    %v1062 = vsel %vm1061, %v1060, 0
    %v1063 = vshrl.u32 %v1062, 5
    %v1064 = vand.u32 %v1062, 31
    %v1065 = vsub.s32 32, %v1064
    %v1066 = vshrl.u32 683565275, %v1065
    %v1067 = vshll.u32 683565275, %v1064
    %v1068 = vshrl.u32 2475754826, %v1065
    %v1069 = vor.u32 %v1067, %v1068
    %v1070 = vshll.u32 2475754826, %v1064
    %v1071 = vshrl.u32 2131351028, %v1065
    %v1072 = vor.u32 %v1070, %v1071
    %v1073 = vshll.u32 2131351028, %v1064
    %v1074 = vshrl.u32 2102212464, %v1065
    %v1075 = vor.u32 %v1073, %v1074
    %v1076 = vshll.u32 2102212464, %v1064
    %v1077 = vshrl.u32 920167782, %v1065
    %v1078 = vor.u32 %v1076, %v1077
    %v1079 = vshll.u32 920167782, %v1064
    %v1080 = vshrl.u32 1326507024, %v1065
    %v1081 = vor.u32 %v1079, %v1080
    %vm1082 = vcmp.lt.s32.totalorder %v1063, 1
    %vm1083 = vcmp.lt.s32.totalorder %v1063, 2
    %vm1084 = vcmp.lt.s32.totalorder %v1063, 3
    %vm1085 = vcmp.lt.s32.totalorder %v1063, 4
    %v1086 = vsel %vm1082, %v1066, %v1069
    %v1087 = vsel %vm1085, %v1075, 2102212464
    %v1088 = vsel %vm1084, %v1072, %v1087
    %v1089 = vsel %vm1083, %v1086, %v1088
    %v1090 = vsel %vm1082, %v1069, %v1072
    %v1091 = vsel %vm1085, %v1078, 920167782
    %v1092 = vsel %vm1084, %v1075, %v1091
    %v1093 = vsel %vm1083, %v1090, %v1092
    %v1094 = vsel %vm1082, %v1072, %v1075
    %v1095 = vsel %vm1085, %v1081, 1326507024
    %v1096 = vsel %vm1084, %v1078, %v1095
    %v1097 = vsel %vm1083, %v1094, %v1096
    %v1098 = vshll.u32 %v1058, 8
    %v1099 = vand.u32 %v1098, 65535
    %v1100 = vshrl.u32 %v1098, 16
    %v1101 = vand.u32 %v1097, 65535
    %v1102 = vshrl.u32 %v1097, 16
    %v1103 = vmul.u32 %v1099, %v1101
    %v1104 = vmul.u32 %v1099, %v1102
    %v1105 = vmul.u32 %v1100, %v1101
    %v1106 = vmul.u32 %v1100, %v1102
    %v1107 = vshll.u32 %v1104, 16
    %v1108 = vshrl.u32 %v1104, 16
    %v1109 = vshll.u32 %v1105, 16
    %v1110 = vshrl.u32 %v1105, 16
    %vm1111 = vc.u32 %v1103, %v1107
    %v1112 = vsel %vm1111, 1, 0
    %v1113 = vadd.s32 %v1103, %v1107
    %v1114 = vadd.s32 %v1106, %v1112
    %vm1115 = vc.u32 %v1113, %v1109
    %v1116 = vsel %vm1115, 1, 0
    %v1117 = vadd.s32 %v1113, %v1109
    %v1118 = vadd.s32 %v1114, %v1116
    %v1119 = vadd.s32 %v1118, %v1108
    %v1120 = vadd.s32 %v1119, %v1110
    %v1121 = vand.u32 %v1098, 65535
    %v1122 = vshrl.u32 %v1098, 16
    %v1123 = vand.u32 %v1093, 65535
    %v1124 = vshrl.u32 %v1093, 16
    %v1125 = vmul.u32 %v1121, %v1123
    %v1126 = vmul.u32 %v1121, %v1124
    %v1127 = vmul.u32 %v1122, %v1123
    %v1128 = vmul.u32 %v1122, %v1124
    %v1129 = vshll.u32 %v1126, 16
    %v1130 = vshrl.u32 %v1126, 16
    %v1131 = vshll.u32 %v1127, 16
    %v1132 = vshrl.u32 %v1127, 16
    %vm1133 = vc.u32 %v1125, %v1129
    %v1134 = vsel %vm1133, 1, 0
    %v1135 = vadd.s32 %v1125, %v1129
    %v1136 = vadd.s32 %v1128, %v1134
    %vm1137 = vc.u32 %v1135, %v1131
    %v1138 = vsel %vm1137, 1, 0
    %v1139 = vadd.s32 %v1135, %v1131
    %v1140 = vadd.s32 %v1136, %v1138
    %v1141 = vadd.s32 %v1140, %v1130
    %v1142 = vadd.s32 %v1141, %v1132
    %v1143 = vmul.u32 %v1098, %v1089
    %v1144 = vadd.s32 %v1120, %v1139
    %vm1145 = vc.u32 %v1120, %v1139
    %v1146 = vadd.s32 %v1142, 1
    %v1147 = vsel %vm1145, %v1146, %v1142
    %v1148 = vadd.s32 %v1143, %v1147
    %v1149 = vadd.s32 %v1148, 536870912
    %v1150 = vshrl.u32 %v1149, 30
    %v1151 = vshll.u32 %v1150, 30
    %v1152 = vsub.s32 %v1148, %v1151
    %vm1153 = vcmp.lt.s32.totalorder %v1152, 0
    %v1154 = vsub.s32 0, %v1152
    %v1155 = vsel %vm1153, %v1154, %v1152
    %v1156 = vclz %v1155
    %v1157 = vsub.s32 %v1156, 2
    %vm1158 = vcmp.gt.s32.totalorder 0, %v1157
    %v1159 = vsel %vm1158, 0, %v1157
    %v1160 = vsub.s32 32, %v1159
    %v1161 = vshll.u32 %v1152, %v1159
    %v1162 = vshrl.u32 %v1144, %v1160
    %v1163 = vor.u32 %v1161, %v1162
    %v1164 = vsub.s32 4294967266, %v1159
    %v1165 = vadd.s32 %v1164, 127
    %v1166 = vshll.u32 %v1165, 23
    %v1167 = vor.u32 4788187, %v1166
    %v1168 = vand.u32 2147483647, %v1167
    %v1170 = vcvt.s32.f32 %v1163
    %v1171 = vmul.f32 %v1170, %v1168
    %v1172 = vxor.u32 %v1171, 2147483648
    %v1173 = vsel %vm1052, %v1172, %v1171
    %v1174 = vsub.s32 4, %v1150
    %v1175 = vsel %vm1052, %v1174, %v1150
    %v1176 = vsel %vm1051, %v1049, %v1173
    %v1177 = vsel %vm1051, 0, %v1175
    %v1178 = vmul.f32 %v1176, %v1176
    %v1179 = vmul.f32 %v1178, -0.001358992
    %v1180 = vadd.f32 %v1179, 0.041655596
    %v1181 = vmul.f32 %v1178, %v1180
    %v1182 = vadd.f32 %v1181, -0.4999988
    %v1183 = vmul.f32 %v1178, %v1182
    %v1184 = vadd.f32 1.0, %v1183
    %v1185 = vmul.f32 %v1176, %v1176
    %v1186 = vmul.f32 %v1185, -0.00019511016
    %v1187 = vadd.f32 %v1186, 0.008332121
    %v1188 = vmul.f32 %v1185, %v1187
    %v1189 = vadd.f32 %v1188, -0.16666654
    %v1190 = vmul.f32 %v1185, %v1189
    %v1191 = vadd.f32 %v1190, 1.0
    %v1192 = vmul.f32 %v1191, %v1176
    %vm1193 = vweird.f32 %v1049
    %v1194 = vadd.s32 %v1177, 3
    %v1195 = vand.u32 %v1194, 3
    %vm1196 = vcmp.lt.s32.totalorder %v1195, 2
    %vm1197 = vcmp.eq.s32.totalorder %v1195, 0
    %v1198 = vxor.u32 %v1192, 2147483648
    %v1199 = vsel %vm1197, %v1184, %v1198
    %vm1200 = vcmp.eq.s32.totalorder %v1195, 2
    %v1201 = vxor.u32 %v1184, 2147483648
    %v1202 = vsel %vm1200, %v1201, %v1192
    %v1203 = vsel %vm1196, %v1199, %v1202
    %v1204 = vsel %vm1193, nan, %v1203
    %v1205 = vstv %s1044
    %v1206 = vmul.f32 %v1205, %v1204
    %v1207 = vadd.f32 %v1042, %v1206
    %s1208 = sld [smem:[#allocation3 + $0x7]]
    %s1209 = sld [smem:[#allocation3 + $0x87]]
    %s1210 = sld [smem:[#allocation3 + $0x107]]
    %v1211 = vstv %s1208
    %v1212 = vmul.f32 %v41, %v1211
    %v1213 = vstv %s1210
    %v1214 = vsub.f32 %v1213, %v1212
    %v1215 = vand.u32 2147483647, %v1214
    %vm1216 = vcmp.le.f32.partialorder %v1215, 0.7853982
    %vm1217 = vcmp.lt.s32.totalorder %v1214, 0
    %v1218 = vand.u32 %v1214, 2139095040
    %v1219 = vshrl.u32 %v1218, 23
    %v1220 = vsub.s32 %v1219, 127
    %v1221 = vand.u32 2147483647, %v1214
    %v1222 = vand.u32 %v1221, 8388607
    %v1223 = vor.u32 %v1222, 8388608
    %v1224 = vsub.s32 0, %v1223
    %v1225 = vadd.s32 %v1220, 1
    %vm1226 = vcmp.gt.s32.totalorder %v1225, 0
    %v1227 = vsel %vm1226, %v1225, 0
    %v1228 = vshrl.u32 %v1227, 5
    %v1229 = vand.u32 %v1227, 31
    %v1230 = vsub.s32 32, %v1229
    %v1231 = vshrl.u32 683565275, %v1230
    %v1232 = vshll.u32 683565275, %v1229
    %v1233 = vshrl.u32 2475754826, %v1230
    %v1234 = vor.u32 %v1232, %v1233
    %v1235 = vshll.u32 2475754826, %v1229
    %v1236 = vshrl.u32 2131351028, %v1230
    %v1237 = vor.u32 %v1235, %v1236
    %v1238 = vshll.u32 2131351028, %v1229
    %v1239 = vshrl.u32 2102212464, %v1230
    %v1240 = vor.u32 %v1238, %v1239
    %v1241 = vshll.u32 2102212464, %v1229
    %v1242 = vshrl.u32 920167782, %v1230
    %v1243 = vor.u32 %v1241, %v1242
    %v1244 = vshll.u32 920167782, %v1229
    %v1245 = vshrl.u32 1326507024, %v1230
    %v1246 = vor.u32 %v1244, %v1245
    %vm1247 = vcmp.lt.s32.totalorder %v1228, 1
    %vm1248 = vcmp.lt.s32.totalorder %v1228, 2
    %vm1249 = vcmp.lt.s32.totalorder %v1228, 3
    %vm1250 = vcmp.lt.s32.totalorder %v1228, 4
    %v1251 = vsel %vm1247, %v1231, %v1234
    %v1252 = vsel %vm1250, %v1240, 2102212464
    %v1253 = vsel %vm1249, %v1237, %v1252
    %v1254 = vsel %vm1248, %v1251, %v1253
    %v1255 = vsel %vm1247, %v1234, %v1237
    %v1256 = vsel %vm1250, %v1243, 920167782
    %v1257 = vsel %vm1249, %v1240, %v1256
    %v1258 = vsel %vm1248, %v1255, %v1257
    %v1259 = vsel %vm1247, %v1237, %v1240
    %v1260 = vsel %vm1250, %v1246, 1326507024
    %v1261 = vsel %vm1249, %v1243, %v1260
    %v1262 = vsel %vm1248, %v1259, %v1261
    %v1263 = vshll.u32 %v1223, 8
    %v1264 = vand.u32 %v1263, 65535
    %v1265 = vshrl.u32 %v1263, 16
    %v1266 = vand.u32 %v1262, 65535
    %v1267 = vshrl.u32 %v1262, 16
    %v1268 = vmul.u32 %v1264, %v1266
    %v1269 = vmul.u32 %v1264, %v1267
    %v1270 = vmul.u32 %v1265, %v1266
    %v1271 = vmul.u32 %v1265, %v1267
    %v1272 = vshll.u32 %v1269, 16
    %v1273 = vshrl.u32 %v1269, 16
    %v1274 = vshll.u32 %v1270, 16
    %v1275 = vshrl.u32 %v1270, 16
    %vm1276 = vc.u32 %v1268, %v1272
    %v1277 = vsel %vm1276, 1, 0
    %v1278 = vadd.s32 %v1268, %v1272
    %v1279 = vadd.s32 %v1271, %v1277
    %vm1280 = vc.u32 %v1278, %v1274
    %v1281 = vsel %vm1280, 1, 0
    %v1282 = vadd.s32 %v1278, %v1274
    %v1283 = vadd.s32 %v1279, %v1281
    %v1284 = vadd.s32 %v1283, %v1273
    %v1285 = vadd.s32 %v1284, %v1275
    %v1286 = vand.u32 %v1263, 65535
    %v1287 = vshrl.u32 %v1263, 16
    %v1288 = vand.u32 %v1258, 65535
    %v1289 = vshrl.u32 %v1258, 16
    %v1290 = vmul.u32 %v1286, %v1288
    %v1291 = vmul.u32 %v1286, %v1289
    %v1292 = vmul.u32 %v1287, %v1288
    %v1293 = vmul.u32 %v1287, %v1289
    %v1294 = vshll.u32 %v1291, 16
    %v1295 = vshrl.u32 %v1291, 16
    %v1296 = vshll.u32 %v1292, 16
    %v1297 = vshrl.u32 %v1292, 16
    %vm1298 = vc.u32 %v1290, %v1294
    %v1299 = vsel %vm1298, 1, 0
    %v1300 = vadd.s32 %v1290, %v1294
    %v1301 = vadd.s32 %v1293, %v1299
    %vm1302 = vc.u32 %v1300, %v1296
    %v1303 = vsel %vm1302, 1, 0
    %v1304 = vadd.s32 %v1300, %v1296
    %v1305 = vadd.s32 %v1301, %v1303
    %v1306 = vadd.s32 %v1305, %v1295
    %v1307 = vadd.s32 %v1306, %v1297
    %v1308 = vmul.u32 %v1263, %v1254
    %v1309 = vadd.s32 %v1285, %v1304
    %vm1310 = vc.u32 %v1285, %v1304
    %v1311 = vadd.s32 %v1307, 1
    %v1312 = vsel %vm1310, %v1311, %v1307
    %v1313 = vadd.s32 %v1308, %v1312
    %v1314 = vadd.s32 %v1313, 536870912
    %v1315 = vshrl.u32 %v1314, 30
    %v1316 = vshll.u32 %v1315, 30
    %v1317 = vsub.s32 %v1313, %v1316
    %vm1318 = vcmp.lt.s32.totalorder %v1317, 0
    %v1319 = vsub.s32 0, %v1317
    %v1320 = vsel %vm1318, %v1319, %v1317
    %v1321 = vclz %v1320
    %v1322 = vsub.s32 %v1321, 2
    %vm1323 = vcmp.gt.s32.totalorder 0, %v1322
    %v1324 = vsel %vm1323, 0, %v1322
    %v1325 = vsub.s32 32, %v1324
    %v1326 = vshll.u32 %v1317, %v1324
    %v1327 = vshrl.u32 %v1309, %v1325
    %v1328 = vor.u32 %v1326, %v1327
    %v1329 = vsub.s32 4294967266, %v1324
    %v1330 = vadd.s32 %v1329, 127
    %v1331 = vshll.u32 %v1330, 23
    %v1332 = vor.u32 4788187, %v1331
    %v1333 = vand.u32 2147483647, %v1332
    %v1335 = vcvt.s32.f32 %v1328
    %v1336 = vmul.f32 %v1335, %v1333
    %v1337 = vxor.u32 %v1336, 2147483648
    %v1338 = vsel %vm1217, %v1337, %v1336
    %v1339 = vsub.s32 4, %v1315
    %v1340 = vsel %vm1217, %v1339, %v1315
    %v1341 = vsel %vm1216, %v1214, %v1338
    %v1342 = vsel %vm1216, 0, %v1340
    %v1343 = vmul.f32 %v1341, %v1341
    %v1344 = vmul.f32 %v1343, -0.001358992
    %v1345 = vadd.f32 %v1344, 0.041655596
    %v1346 = vmul.f32 %v1343, %v1345
    %v1347 = vadd.f32 %v1346, -0.4999988
    %v1348 = vmul.f32 %v1343, %v1347
    %v1349 = vadd.f32 1.0, %v1348
    %v1350 = vmul.f32 %v1341, %v1341
    %v1351 = vmul.f32 %v1350, -0.00019511016
    %v1352 = vadd.f32 %v1351, 0.008332121
    %v1353 = vmul.f32 %v1350, %v1352
    %v1354 = vadd.f32 %v1353, -0.16666654
    %v1355 = vmul.f32 %v1350, %v1354
    %v1356 = vadd.f32 %v1355, 1.0
    %v1357 = vmul.f32 %v1356, %v1341
    %vm1358 = vweird.f32 %v1214
    %v1359 = vadd.s32 %v1342, 3
    %v1360 = vand.u32 %v1359, 3
    %vm1361 = vcmp.lt.s32.totalorder %v1360, 2
    %vm1362 = vcmp.eq.s32.totalorder %v1360, 0
    %v1363 = vxor.u32 %v1357, 2147483648
    %v1364 = vsel %vm1362, %v1349, %v1363
    %vm1365 = vcmp.eq.s32.totalorder %v1360, 2
    %v1366 = vxor.u32 %v1349, 2147483648
    %v1367 = vsel %vm1365, %v1366, %v1357
    %v1368 = vsel %vm1361, %v1364, %v1367
    %v1369 = vsel %vm1358, nan, %v1368
    %v1370 = vstv %s1209
    %v1371 = vmul.f32 %v1370, %v1369
    %v1372 = vadd.f32 %v1207, %v1371
    %s1373 = sld [smem:[#allocation3 + $0x8]]
    %s1374 = sld [smem:[#allocation3 + $0x88]]
    %s1375 = sld [smem:[#allocation3 + $0x108]]
    %v1376 = vstv %s1373
    %v1377 = vmul.f32 %v41, %v1376
    %v1378 = vstv %s1375
    %v1379 = vsub.f32 %v1378, %v1377
    %v1380 = vand.u32 2147483647, %v1379
    %vm1381 = vcmp.le.f32.partialorder %v1380, 0.7853982
    %vm1382 = vcmp.lt.s32.totalorder %v1379, 0
    %v1383 = vand.u32 %v1379, 2139095040
    %v1384 = vshrl.u32 %v1383, 23
    %v1385 = vsub.s32 %v1384, 127
    %v1386 = vand.u32 2147483647, %v1379
    %v1387 = vand.u32 %v1386, 8388607
    %v1388 = vor.u32 %v1387, 8388608
    %v1389 = vsub.s32 0, %v1388
    %v1390 = vadd.s32 %v1385, 1
    %vm1391 = vcmp.gt.s32.totalorder %v1390, 0
    %v1392 = vsel %vm1391, %v1390, 0
    %v1393 = vshrl.u32 %v1392, 5
    %v1394 = vand.u32 %v1392, 31
    %v1395 = vsub.s32 32, %v1394
    %v1396 = vshrl.u32 683565275, %v1395
    %v1397 = vshll.u32 683565275, %v1394
    %v1398 = vshrl.u32 2475754826, %v1395
    %v1399 = vor.u32 %v1397, %v1398
    %v1400 = vshll.u32 2475754826, %v1394
    %v1401 = vshrl.u32 2131351028, %v1395
    %v1402 = vor.u32 %v1400, %v1401
    %v1403 = vshll.u32 2131351028, %v1394
    %v1404 = vshrl.u32 2102212464, %v1395
    %v1405 = vor.u32 %v1403, %v1404
    %v1406 = vshll.u32 2102212464, %v1394
    %v1407 = vshrl.u32 920167782, %v1395
    %v1408 = vor.u32 %v1406, %v1407
    %v1409 = vshll.u32 920167782, %v1394
    %v1410 = vshrl.u32 1326507024, %v1395
    %v1411 = vor.u32 %v1409, %v1410
    %vm1412 = vcmp.lt.s32.totalorder %v1393, 1
    %vm1413 = vcmp.lt.s32.totalorder %v1393, 2
    %vm1414 = vcmp.lt.s32.totalorder %v1393, 3
    %vm1415 = vcmp.lt.s32.totalorder %v1393, 4
    %v1416 = vsel %vm1412, %v1396, %v1399
    %v1417 = vsel %vm1415, %v1405, 2102212464
    %v1418 = vsel %vm1414, %v1402, %v1417
    %v1419 = vsel %vm1413, %v1416, %v1418
    %v1420 = vsel %vm1412, %v1399, %v1402
    %v1421 = vsel %vm1415, %v1408, 920167782
    %v1422 = vsel %vm1414, %v1405, %v1421
    %v1423 = vsel %vm1413, %v1420, %v1422
    %v1424 = vsel %vm1412, %v1402, %v1405
    %v1425 = vsel %vm1415, %v1411, 1326507024
    %v1426 = vsel %vm1414, %v1408, %v1425
    %v1427 = vsel %vm1413, %v1424, %v1426
    %v1428 = vshll.u32 %v1388, 8
    %v1429 = vand.u32 %v1428, 65535
    %v1430 = vshrl.u32 %v1428, 16
    %v1431 = vand.u32 %v1427, 65535
    %v1432 = vshrl.u32 %v1427, 16
    %v1433 = vmul.u32 %v1429, %v1431
    %v1434 = vmul.u32 %v1429, %v1432
    %v1435 = vmul.u32 %v1430, %v1431
    %v1436 = vmul.u32 %v1430, %v1432
    %v1437 = vshll.u32 %v1434, 16
    %v1438 = vshrl.u32 %v1434, 16
    %v1439 = vshll.u32 %v1435, 16
    %v1440 = vshrl.u32 %v1435, 16
    %vm1441 = vc.u32 %v1433, %v1437
    %v1442 = vsel %vm1441, 1, 0
    %v1443 = vadd.s32 %v1433, %v1437
    %v1444 = vadd.s32 %v1436, %v1442
    %vm1445 = vc.u32 %v1443, %v1439
    %v1446 = vsel %vm1445, 1, 0
    %v1447 = vadd.s32 %v1443, %v1439
    %v1448 = vadd.s32 %v1444, %v1446
    %v1449 = vadd.s32 %v1448, %v1438
    %v1450 = vadd.s32 %v1449, %v1440
    %v1451 = vand.u32 %v1428, 65535
    %v1452 = vshrl.u32 %v1428, 16
    %v1453 = vand.u32 %v1423, 65535
    %v1454 = vshrl.u32 %v1423, 16
    %v1455 = vmul.u32 %v1451, %v1453
    %v1456 = vmul.u32 %v1451, %v1454
    %v1457 = vmul.u32 %v1452, %v1453
    %v1458 = vmul.u32 %v1452, %v1454
    %v1459 = vshll.u32 %v1456, 16
    %v1460 = vshrl.u32 %v1456, 16
    %v1461 = vshll.u32 %v1457, 16
    %v1462 = vshrl.u32 %v1457, 16
    %vm1463 = vc.u32 %v1455, %v1459
    %v1464 = vsel %vm1463, 1, 0
    %v1465 = vadd.s32 %v1455, %v1459
    %v1466 = vadd.s32 %v1458, %v1464
    %vm1467 = vc.u32 %v1465, %v1461
    %v1468 = vsel %vm1467, 1, 0
    %v1469 = vadd.s32 %v1465, %v1461
    %v1470 = vadd.s32 %v1466, %v1468
    %v1471 = vadd.s32 %v1470, %v1460
    %v1472 = vadd.s32 %v1471, %v1462
    %v1473 = vmul.u32 %v1428, %v1419
    %v1474 = vadd.s32 %v1450, %v1469
    %vm1475 = vc.u32 %v1450, %v1469
    %v1476 = vadd.s32 %v1472, 1
    %v1477 = vsel %vm1475, %v1476, %v1472
    %v1478 = vadd.s32 %v1473, %v1477
    %v1479 = vadd.s32 %v1478, 536870912
    %v1480 = vshrl.u32 %v1479, 30
    %v1481 = vshll.u32 %v1480, 30
    %v1482 = vsub.s32 %v1478, %v1481
    %vm1483 = vcmp.lt.s32.totalorder %v1482, 0
    %v1484 = vsub.s32 0, %v1482
    %v1485 = vsel %vm1483, %v1484, %v1482
    %v1486 = vclz %v1485
    %v1487 = vsub.s32 %v1486, 2
    %vm1488 = vcmp.gt.s32.totalorder 0, %v1487
    %v1489 = vsel %vm1488, 0, %v1487
    %v1490 = vsub.s32 32, %v1489
    %v1491 = vshll.u32 %v1482, %v1489
    %v1492 = vshrl.u32 %v1474, %v1490
    %v1493 = vor.u32 %v1491, %v1492
    %v1494 = vsub.s32 4294967266, %v1489
    %v1495 = vadd.s32 %v1494, 127
    %v1496 = vshll.u32 %v1495, 23
    %v1497 = vor.u32 4788187, %v1496
    %v1498 = vand.u32 2147483647, %v1497
    %v1500 = vcvt.s32.f32 %v1493
    %v1501 = vmul.f32 %v1500, %v1498
    %v1502 = vxor.u32 %v1501, 2147483648
    %v1503 = vsel %vm1382, %v1502, %v1501
    %v1504 = vsub.s32 4, %v1480
    %v1505 = vsel %vm1382, %v1504, %v1480
    %v1506 = vsel %vm1381, %v1379, %v1503
    %v1507 = vsel %vm1381, 0, %v1505
    %v1508 = vmul.f32 %v1506, %v1506
    %v1509 = vmul.f32 %v1508, -0.001358992
    %v1510 = vadd.f32 %v1509, 0.041655596
    %v1511 = vmul.f32 %v1508, %v1510
    %v1512 = vadd.f32 %v1511, -0.4999988
    %v1513 = vmul.f32 %v1508, %v1512
    %v1514 = vadd.f32 1.0, %v1513
    %v1515 = vmul.f32 %v1506, %v1506
    %v1516 = vmul.f32 %v1515, -0.00019511016
    %v1517 = vadd.f32 %v1516, 0.008332121
    %v1518 = vmul.f32 %v1515, %v1517
    %v1519 = vadd.f32 %v1518, -0.16666654
    %v1520 = vmul.f32 %v1515, %v1519
    %v1521 = vadd.f32 %v1520, 1.0
    %v1522 = vmul.f32 %v1521, %v1506
    %vm1523 = vweird.f32 %v1379
    %v1524 = vadd.s32 %v1507, 3
    %v1525 = vand.u32 %v1524, 3
    %vm1526 = vcmp.lt.s32.totalorder %v1525, 2
    %vm1527 = vcmp.eq.s32.totalorder %v1525, 0
    %v1528 = vxor.u32 %v1522, 2147483648
    %v1529 = vsel %vm1527, %v1514, %v1528
    %vm1530 = vcmp.eq.s32.totalorder %v1525, 2
    %v1531 = vxor.u32 %v1514, 2147483648
    %v1532 = vsel %vm1530, %v1531, %v1522
    %v1533 = vsel %vm1526, %v1529, %v1532
    %v1534 = vsel %vm1523, nan, %v1533
    %v1535 = vstv %s1374
    %v1536 = vmul.f32 %v1535, %v1534
    %v1537 = vadd.f32 %v1372, %v1536
    %s1538 = sld [smem:[#allocation3 + $0x9]]
    %s1539 = sld [smem:[#allocation3 + $0x89]]
    %s1540 = sld [smem:[#allocation3 + $0x109]]
    %v1541 = vstv %s1538
    %v1542 = vmul.f32 %v41, %v1541
    %v1543 = vstv %s1540
    %v1544 = vsub.f32 %v1543, %v1542
    %v1545 = vand.u32 2147483647, %v1544
    %vm1546 = vcmp.le.f32.partialorder %v1545, 0.7853982
    %vm1547 = vcmp.lt.s32.totalorder %v1544, 0
    %v1548 = vand.u32 %v1544, 2139095040
    %v1549 = vshrl.u32 %v1548, 23
    %v1550 = vsub.s32 %v1549, 127
    %v1551 = vand.u32 2147483647, %v1544
    %v1552 = vand.u32 %v1551, 8388607
    %v1553 = vor.u32 %v1552, 8388608
    %v1554 = vsub.s32 0, %v1553
    %v1555 = vadd.s32 %v1550, 1
    %vm1556 = vcmp.gt.s32.totalorder %v1555, 0
    %v1557 = vsel %vm1556, %v1555, 0
    %v1558 = vshrl.u32 %v1557, 5
    %v1559 = vand.u32 %v1557, 31
    %v1560 = vsub.s32 32, %v1559
    %v1561 = vshrl.u32 683565275, %v1560
    %v1562 = vshll.u32 683565275, %v1559
    %v1563 = vshrl.u32 2475754826, %v1560
    %v1564 = vor.u32 %v1562, %v1563
    %v1565 = vshll.u32 2475754826, %v1559
    %v1566 = vshrl.u32 2131351028, %v1560
    %v1567 = vor.u32 %v1565, %v1566
    %v1568 = vshll.u32 2131351028, %v1559
    %v1569 = vshrl.u32 2102212464, %v1560
    %v1570 = vor.u32 %v1568, %v1569
    %v1571 = vshll.u32 2102212464, %v1559
    %v1572 = vshrl.u32 920167782, %v1560
    %v1573 = vor.u32 %v1571, %v1572
    %v1574 = vshll.u32 920167782, %v1559
    %v1575 = vshrl.u32 1326507024, %v1560
    %v1576 = vor.u32 %v1574, %v1575
    %vm1577 = vcmp.lt.s32.totalorder %v1558, 1
    %vm1578 = vcmp.lt.s32.totalorder %v1558, 2
    %vm1579 = vcmp.lt.s32.totalorder %v1558, 3
    %vm1580 = vcmp.lt.s32.totalorder %v1558, 4
    %v1581 = vsel %vm1577, %v1561, %v1564
    %v1582 = vsel %vm1580, %v1570, 2102212464
    %v1583 = vsel %vm1579, %v1567, %v1582
    %v1584 = vsel %vm1578, %v1581, %v1583
    %v1585 = vsel %vm1577, %v1564, %v1567
    %v1586 = vsel %vm1580, %v1573, 920167782
    %v1587 = vsel %vm1579, %v1570, %v1586
    %v1588 = vsel %vm1578, %v1585, %v1587
    %v1589 = vsel %vm1577, %v1567, %v1570
    %v1590 = vsel %vm1580, %v1576, 1326507024
    %v1591 = vsel %vm1579, %v1573, %v1590
    %v1592 = vsel %vm1578, %v1589, %v1591
    %v1593 = vshll.u32 %v1553, 8
    %v1594 = vand.u32 %v1593, 65535
    %v1595 = vshrl.u32 %v1593, 16
    %v1596 = vand.u32 %v1592, 65535
    %v1597 = vshrl.u32 %v1592, 16
    %v1598 = vmul.u32 %v1594, %v1596
    %v1599 = vmul.u32 %v1594, %v1597
    %v1600 = vmul.u32 %v1595, %v1596
    %v1601 = vmul.u32 %v1595, %v1597
    %v1602 = vshll.u32 %v1599, 16
    %v1603 = vshrl.u32 %v1599, 16
    %v1604 = vshll.u32 %v1600, 16
    %v1605 = vshrl.u32 %v1600, 16
    %vm1606 = vc.u32 %v1598, %v1602
    %v1607 = vsel %vm1606, 1, 0
    %v1608 = vadd.s32 %v1598, %v1602
    %v1609 = vadd.s32 %v1601, %v1607
    %vm1610 = vc.u32 %v1608, %v1604
    %v1611 = vsel %vm1610, 1, 0
    %v1612 = vadd.s32 %v1608, %v1604
    %v1613 = vadd.s32 %v1609, %v1611
    %v1614 = vadd.s32 %v1613, %v1603
    %v1615 = vadd.s32 %v1614, %v1605
    %v1616 = vand.u32 %v1593, 65535
    %v1617 = vshrl.u32 %v1593, 16
    %v1618 = vand.u32 %v1588, 65535
    %v1619 = vshrl.u32 %v1588, 16
    %v1620 = vmul.u32 %v1616, %v1618
    %v1621 = vmul.u32 %v1616, %v1619
    %v1622 = vmul.u32 %v1617, %v1618
    %v1623 = vmul.u32 %v1617, %v1619
    %v1624 = vshll.u32 %v1621, 16
    %v1625 = vshrl.u32 %v1621, 16
    %v1626 = vshll.u32 %v1622, 16
    %v1627 = vshrl.u32 %v1622, 16
    %vm1628 = vc.u32 %v1620, %v1624
    %v1629 = vsel %vm1628, 1, 0
    %v1630 = vadd.s32 %v1620, %v1624
    %v1631 = vadd.s32 %v1623, %v1629
    %vm1632 = vc.u32 %v1630, %v1626
    %v1633 = vsel %vm1632, 1, 0
    %v1634 = vadd.s32 %v1630, %v1626
    %v1635 = vadd.s32 %v1631, %v1633
    %v1636 = vadd.s32 %v1635, %v1625
    %v1637 = vadd.s32 %v1636, %v1627
    %v1638 = vmul.u32 %v1593, %v1584
    %v1639 = vadd.s32 %v1615, %v1634
    %vm1640 = vc.u32 %v1615, %v1634
    %v1641 = vadd.s32 %v1637, 1
    %v1642 = vsel %vm1640, %v1641, %v1637
    %v1643 = vadd.s32 %v1638, %v1642
    %v1644 = vadd.s32 %v1643, 536870912
    %v1645 = vshrl.u32 %v1644, 30
    %v1646 = vshll.u32 %v1645, 30
    %v1647 = vsub.s32 %v1643, %v1646
    %vm1648 = vcmp.lt.s32.totalorder %v1647, 0
    %v1649 = vsub.s32 0, %v1647
    %v1650 = vsel %vm1648, %v1649, %v1647
    %v1651 = vclz %v1650
    %v1652 = vsub.s32 %v1651, 2
    %vm1653 = vcmp.gt.s32.totalorder 0, %v1652
    %v1654 = vsel %vm1653, 0, %v1652
    %v1655 = vsub.s32 32, %v1654
    %v1656 = vshll.u32 %v1647, %v1654
    %v1657 = vshrl.u32 %v1639, %v1655
    %v1658 = vor.u32 %v1656, %v1657
    %v1659 = vsub.s32 4294967266, %v1654
    %v1660 = vadd.s32 %v1659, 127
    %v1661 = vshll.u32 %v1660, 23
    %v1662 = vor.u32 4788187, %v1661
    %v1663 = vand.u32 2147483647, %v1662
    %v1665 = vcvt.s32.f32 %v1658
    %v1666 = vmul.f32 %v1665, %v1663
    %v1667 = vxor.u32 %v1666, 2147483648
    %v1668 = vsel %vm1547, %v1667, %v1666
    %v1669 = vsub.s32 4, %v1645
    %v1670 = vsel %vm1547, %v1669, %v1645
    %v1671 = vsel %vm1546, %v1544, %v1668
    %v1672 = vsel %vm1546, 0, %v1670
    %v1673 = vmul.f32 %v1671, %v1671
    %v1674 = vmul.f32 %v1673, -0.001358992
    %v1675 = vadd.f32 %v1674, 0.041655596
    %v1676 = vmul.f32 %v1673, %v1675
    %v1677 = vadd.f32 %v1676, -0.4999988
    %v1678 = vmul.f32 %v1673, %v1677
    %v1679 = vadd.f32 1.0, %v1678
    %v1680 = vmul.f32 %v1671, %v1671
    %v1681 = vmul.f32 %v1680, -0.00019511016
    %v1682 = vadd.f32 %v1681, 0.008332121
    %v1683 = vmul.f32 %v1680, %v1682
    %v1684 = vadd.f32 %v1683, -0.16666654
    %v1685 = vmul.f32 %v1680, %v1684
    %v1686 = vadd.f32 %v1685, 1.0
    %v1687 = vmul.f32 %v1686, %v1671
    %vm1688 = vweird.f32 %v1544
    %v1689 = vadd.s32 %v1672, 3
    %v1690 = vand.u32 %v1689, 3
    %vm1691 = vcmp.lt.s32.totalorder %v1690, 2
    %vm1692 = vcmp.eq.s32.totalorder %v1690, 0
    %v1693 = vxor.u32 %v1687, 2147483648
    %v1694 = vsel %vm1692, %v1679, %v1693
    %vm1695 = vcmp.eq.s32.totalorder %v1690, 2
    %v1696 = vxor.u32 %v1679, 2147483648
    %v1697 = vsel %vm1695, %v1696, %v1687
    %v1698 = vsel %vm1691, %v1694, %v1697
    %v1699 = vsel %vm1688, nan, %v1698
    %v1700 = vstv %s1539
    %v1701 = vmul.f32 %v1700, %v1699
    %v1702 = vadd.f32 %v1537, %v1701
    %s1703 = sld [smem:[#allocation3 + $0xa]]
    %s1704 = sld [smem:[#allocation3 + $0x8a]]
    %s1705 = sld [smem:[#allocation3 + $0x10a]]
    %v1706 = vstv %s1703
    %v1707 = vmul.f32 %v41, %v1706
    %v1708 = vstv %s1705
    %v1709 = vsub.f32 %v1708, %v1707
    %v1710 = vand.u32 2147483647, %v1709
    %vm1711 = vcmp.le.f32.partialorder %v1710, 0.7853982
    %vm1712 = vcmp.lt.s32.totalorder %v1709, 0
    %v1713 = vand.u32 %v1709, 2139095040
    %v1714 = vshrl.u32 %v1713, 23
    %v1715 = vsub.s32 %v1714, 127
    %v1716 = vand.u32 2147483647, %v1709
    %v1717 = vand.u32 %v1716, 8388607
    %v1718 = vor.u32 %v1717, 8388608
    %v1719 = vsub.s32 0, %v1718
    %v1720 = vadd.s32 %v1715, 1
    %vm1721 = vcmp.gt.s32.totalorder %v1720, 0
    %v1722 = vsel %vm1721, %v1720, 0
    %v1723 = vshrl.u32 %v1722, 5
    %v1724 = vand.u32 %v1722, 31
    %v1725 = vsub.s32 32, %v1724
    %v1726 = vshrl.u32 683565275, %v1725
    %v1727 = vshll.u32 683565275, %v1724
    %v1728 = vshrl.u32 2475754826, %v1725
    %v1729 = vor.u32 %v1727, %v1728
    %v1730 = vshll.u32 2475754826, %v1724
    %v1731 = vshrl.u32 2131351028, %v1725
    %v1732 = vor.u32 %v1730, %v1731
    %v1733 = vshll.u32 2131351028, %v1724
    %v1734 = vshrl.u32 2102212464, %v1725
    %v1735 = vor.u32 %v1733, %v1734
    %v1736 = vshll.u32 2102212464, %v1724
    %v1737 = vshrl.u32 920167782, %v1725
    %v1738 = vor.u32 %v1736, %v1737
    %v1739 = vshll.u32 920167782, %v1724
    %v1740 = vshrl.u32 1326507024, %v1725
    %v1741 = vor.u32 %v1739, %v1740
    %vm1742 = vcmp.lt.s32.totalorder %v1723, 1
    %vm1743 = vcmp.lt.s32.totalorder %v1723, 2
    %vm1744 = vcmp.lt.s32.totalorder %v1723, 3
    %vm1745 = vcmp.lt.s32.totalorder %v1723, 4
    %v1746 = vsel %vm1742, %v1726, %v1729
    %v1747 = vsel %vm1745, %v1735, 2102212464
    %v1748 = vsel %vm1744, %v1732, %v1747
    %v1749 = vsel %vm1743, %v1746, %v1748
    %v1750 = vsel %vm1742, %v1729, %v1732
    %v1751 = vsel %vm1745, %v1738, 920167782
    %v1752 = vsel %vm1744, %v1735, %v1751
    %v1753 = vsel %vm1743, %v1750, %v1752
    %v1754 = vsel %vm1742, %v1732, %v1735
    %v1755 = vsel %vm1745, %v1741, 1326507024
    %v1756 = vsel %vm1744, %v1738, %v1755
    %v1757 = vsel %vm1743, %v1754, %v1756
    %v1758 = vshll.u32 %v1718, 8
    %v1759 = vand.u32 %v1758, 65535
    %v1760 = vshrl.u32 %v1758, 16
    %v1761 = vand.u32 %v1757, 65535
    %v1762 = vshrl.u32 %v1757, 16
    %v1763 = vmul.u32 %v1759, %v1761
    %v1764 = vmul.u32 %v1759, %v1762
    %v1765 = vmul.u32 %v1760, %v1761
    %v1766 = vmul.u32 %v1760, %v1762
    %v1767 = vshll.u32 %v1764, 16
    %v1768 = vshrl.u32 %v1764, 16
    %v1769 = vshll.u32 %v1765, 16
    %v1770 = vshrl.u32 %v1765, 16
    %vm1771 = vc.u32 %v1763, %v1767
    %v1772 = vsel %vm1771, 1, 0
    %v1773 = vadd.s32 %v1763, %v1767
    %v1774 = vadd.s32 %v1766, %v1772
    %vm1775 = vc.u32 %v1773, %v1769
    %v1776 = vsel %vm1775, 1, 0
    %v1777 = vadd.s32 %v1773, %v1769
    %v1778 = vadd.s32 %v1774, %v1776
    %v1779 = vadd.s32 %v1778, %v1768
    %v1780 = vadd.s32 %v1779, %v1770
    %v1781 = vand.u32 %v1758, 65535
    %v1782 = vshrl.u32 %v1758, 16
    %v1783 = vand.u32 %v1753, 65535
    %v1784 = vshrl.u32 %v1753, 16
    %v1785 = vmul.u32 %v1781, %v1783
    %v1786 = vmul.u32 %v1781, %v1784
    %v1787 = vmul.u32 %v1782, %v1783
    %v1788 = vmul.u32 %v1782, %v1784
    %v1789 = vshll.u32 %v1786, 16
    %v1790 = vshrl.u32 %v1786, 16
    %v1791 = vshll.u32 %v1787, 16
    %v1792 = vshrl.u32 %v1787, 16
    %vm1793 = vc.u32 %v1785, %v1789
    %v1794 = vsel %vm1793, 1, 0
    %v1795 = vadd.s32 %v1785, %v1789
    %v1796 = vadd.s32 %v1788, %v1794
    %vm1797 = vc.u32 %v1795, %v1791
    %v1798 = vsel %vm1797, 1, 0
    %v1799 = vadd.s32 %v1795, %v1791
    %v1800 = vadd.s32 %v1796, %v1798
    %v1801 = vadd.s32 %v1800, %v1790
    %v1802 = vadd.s32 %v1801, %v1792
    %v1803 = vmul.u32 %v1758, %v1749
    %v1804 = vadd.s32 %v1780, %v1799
    %vm1805 = vc.u32 %v1780, %v1799
    %v1806 = vadd.s32 %v1802, 1
    %v1807 = vsel %vm1805, %v1806, %v1802
    %v1808 = vadd.s32 %v1803, %v1807
    %v1809 = vadd.s32 %v1808, 536870912
    %v1810 = vshrl.u32 %v1809, 30
    %v1811 = vshll.u32 %v1810, 30
    %v1812 = vsub.s32 %v1808, %v1811
    %vm1813 = vcmp.lt.s32.totalorder %v1812, 0
    %v1814 = vsub.s32 0, %v1812
    %v1815 = vsel %vm1813, %v1814, %v1812
    %v1816 = vclz %v1815
    %v1817 = vsub.s32 %v1816, 2
    %vm1818 = vcmp.gt.s32.totalorder 0, %v1817
    %v1819 = vsel %vm1818, 0, %v1817
    %v1820 = vsub.s32 32, %v1819
    %v1821 = vshll.u32 %v1812, %v1819
    %v1822 = vshrl.u32 %v1804, %v1820
    %v1823 = vor.u32 %v1821, %v1822
    %v1824 = vsub.s32 4294967266, %v1819
    %v1825 = vadd.s32 %v1824, 127
    %v1826 = vshll.u32 %v1825, 23
    %v1827 = vor.u32 4788187, %v1826
    %v1828 = vand.u32 2147483647, %v1827
    %v1830 = vcvt.s32.f32 %v1823
    %v1831 = vmul.f32 %v1830, %v1828
    %v1832 = vxor.u32 %v1831, 2147483648
    %v1833 = vsel %vm1712, %v1832, %v1831
    %v1834 = vsub.s32 4, %v1810
    %v1835 = vsel %vm1712, %v1834, %v1810
    %v1836 = vsel %vm1711, %v1709, %v1833
    %v1837 = vsel %vm1711, 0, %v1835
    %v1838 = vmul.f32 %v1836, %v1836
    %v1839 = vmul.f32 %v1838, -0.001358992
    %v1840 = vadd.f32 %v1839, 0.041655596
    %v1841 = vmul.f32 %v1838, %v1840
    %v1842 = vadd.f32 %v1841, -0.4999988
    %v1843 = vmul.f32 %v1838, %v1842
    %v1844 = vadd.f32 1.0, %v1843
    %v1845 = vmul.f32 %v1836, %v1836
    %v1846 = vmul.f32 %v1845, -0.00019511016
    %v1847 = vadd.f32 %v1846, 0.008332121
    %v1848 = vmul.f32 %v1845, %v1847
    %v1849 = vadd.f32 %v1848, -0.16666654
    %v1850 = vmul.f32 %v1845, %v1849
    %v1851 = vadd.f32 %v1850, 1.0
    %v1852 = vmul.f32 %v1851, %v1836
    %vm1853 = vweird.f32 %v1709
    %v1854 = vadd.s32 %v1837, 3
    %v1855 = vand.u32 %v1854, 3
    %vm1856 = vcmp.lt.s32.totalorder %v1855, 2
    %vm1857 = vcmp.eq.s32.totalorder %v1855, 0
    %v1858 = vxor.u32 %v1852, 2147483648
    %v1859 = vsel %vm1857, %v1844, %v1858
    %vm1860 = vcmp.eq.s32.totalorder %v1855, 2
    %v1861 = vxor.u32 %v1844, 2147483648
    %v1862 = vsel %vm1860, %v1861, %v1852
    %v1863 = vsel %vm1856, %v1859, %v1862
    %v1864 = vsel %vm1853, nan, %v1863
    %v1865 = vstv %s1704
    %v1866 = vmul.f32 %v1865, %v1864
    %v1867 = vadd.f32 %v1702, %v1866
    %s1868 = sld [smem:[#allocation3 + $0xb]]
    %s1869 = sld [smem:[#allocation3 + $0x8b]]
    %s1870 = sld [smem:[#allocation3 + $0x10b]]
    %v1871 = vstv %s1868
    %v1872 = vmul.f32 %v41, %v1871
    %v1873 = vstv %s1870
    %v1874 = vsub.f32 %v1873, %v1872
    %v1875 = vand.u32 2147483647, %v1874
    %vm1876 = vcmp.le.f32.partialorder %v1875, 0.7853982
    %vm1877 = vcmp.lt.s32.totalorder %v1874, 0
    %v1878 = vand.u32 %v1874, 2139095040
    %v1879 = vshrl.u32 %v1878, 23
    %v1880 = vsub.s32 %v1879, 127
    %v1881 = vand.u32 2147483647, %v1874
    %v1882 = vand.u32 %v1881, 8388607
    %v1883 = vor.u32 %v1882, 8388608
    %v1884 = vsub.s32 0, %v1883
    %v1885 = vadd.s32 %v1880, 1
    %vm1886 = vcmp.gt.s32.totalorder %v1885, 0
    %v1887 = vsel %vm1886, %v1885, 0
    %v1888 = vshrl.u32 %v1887, 5
    %v1889 = vand.u32 %v1887, 31
    %v1890 = vsub.s32 32, %v1889
    %v1891 = vshrl.u32 683565275, %v1890
    %v1892 = vshll.u32 683565275, %v1889
    %v1893 = vshrl.u32 2475754826, %v1890
    %v1894 = vor.u32 %v1892, %v1893
    %v1895 = vshll.u32 2475754826, %v1889
    %v1896 = vshrl.u32 2131351028, %v1890
    %v1897 = vor.u32 %v1895, %v1896
    %v1898 = vshll.u32 2131351028, %v1889
    %v1899 = vshrl.u32 2102212464, %v1890
    %v1900 = vor.u32 %v1898, %v1899
    %v1901 = vshll.u32 2102212464, %v1889
    %v1902 = vshrl.u32 920167782, %v1890
    %v1903 = vor.u32 %v1901, %v1902
    %v1904 = vshll.u32 920167782, %v1889
    %v1905 = vshrl.u32 1326507024, %v1890
    %v1906 = vor.u32 %v1904, %v1905
    %vm1907 = vcmp.lt.s32.totalorder %v1888, 1
    %vm1908 = vcmp.lt.s32.totalorder %v1888, 2
    %vm1909 = vcmp.lt.s32.totalorder %v1888, 3
    %vm1910 = vcmp.lt.s32.totalorder %v1888, 4
    %v1911 = vsel %vm1907, %v1891, %v1894
    %v1912 = vsel %vm1910, %v1900, 2102212464
    %v1913 = vsel %vm1909, %v1897, %v1912
    %v1914 = vsel %vm1908, %v1911, %v1913
    %v1915 = vsel %vm1907, %v1894, %v1897
    %v1916 = vsel %vm1910, %v1903, 920167782
    %v1917 = vsel %vm1909, %v1900, %v1916
    %v1918 = vsel %vm1908, %v1915, %v1917
    %v1919 = vsel %vm1907, %v1897, %v1900
    %v1920 = vsel %vm1910, %v1906, 1326507024
    %v1921 = vsel %vm1909, %v1903, %v1920
    %v1922 = vsel %vm1908, %v1919, %v1921
    %v1923 = vshll.u32 %v1883, 8
    %v1924 = vand.u32 %v1923, 65535
    %v1925 = vshrl.u32 %v1923, 16
    %v1926 = vand.u32 %v1922, 65535
    %v1927 = vshrl.u32 %v1922, 16
    %v1928 = vmul.u32 %v1924, %v1926
    %v1929 = vmul.u32 %v1924, %v1927
    %v1930 = vmul.u32 %v1925, %v1926
    %v1931 = vmul.u32 %v1925, %v1927
    %v1932 = vshll.u32 %v1929, 16
    %v1933 = vshrl.u32 %v1929, 16
    %v1934 = vshll.u32 %v1930, 16
    %v1935 = vshrl.u32 %v1930, 16
    %vm1936 = vc.u32 %v1928, %v1932
    %v1937 = vsel %vm1936, 1, 0
    %v1938 = vadd.s32 %v1928, %v1932
    %v1939 = vadd.s32 %v1931, %v1937
    %vm1940 = vc.u32 %v1938, %v1934
    %v1941 = vsel %vm1940, 1, 0
    %v1942 = vadd.s32 %v1938, %v1934
    %v1943 = vadd.s32 %v1939, %v1941
    %v1944 = vadd.s32 %v1943, %v1933
    %v1945 = vadd.s32 %v1944, %v1935
    %v1946 = vand.u32 %v1923, 65535
    %v1947 = vshrl.u32 %v1923, 16
    %v1948 = vand.u32 %v1918, 65535
    %v1949 = vshrl.u32 %v1918, 16
    %v1950 = vmul.u32 %v1946, %v1948
    %v1951 = vmul.u32 %v1946, %v1949
    %v1952 = vmul.u32 %v1947, %v1948
    %v1953 = vmul.u32 %v1947, %v1949
    %v1954 = vshll.u32 %v1951, 16
    %v1955 = vshrl.u32 %v1951, 16
    %v1956 = vshll.u32 %v1952, 16
    %v1957 = vshrl.u32 %v1952, 16
    %vm1958 = vc.u32 %v1950, %v1954
    %v1959 = vsel %vm1958, 1, 0
    %v1960 = vadd.s32 %v1950, %v1954
    %v1961 = vadd.s32 %v1953, %v1959
    %vm1962 = vc.u32 %v1960, %v1956
    %v1963 = vsel %vm1962, 1, 0
    %v1964 = vadd.s32 %v1960, %v1956
    %v1965 = vadd.s32 %v1961, %v1963
    %v1966 = vadd.s32 %v1965, %v1955
    %v1967 = vadd.s32 %v1966, %v1957
    %v1968 = vmul.u32 %v1923, %v1914
    %v1969 = vadd.s32 %v1945, %v1964
    %vm1970 = vc.u32 %v1945, %v1964
    %v1971 = vadd.s32 %v1967, 1
    %v1972 = vsel %vm1970, %v1971, %v1967
    %v1973 = vadd.s32 %v1968, %v1972
    %v1974 = vadd.s32 %v1973, 536870912
    %v1975 = vshrl.u32 %v1974, 30
    %v1976 = vshll.u32 %v1975, 30
    %v1977 = vsub.s32 %v1973, %v1976
    %vm1978 = vcmp.lt.s32.totalorder %v1977, 0
    %v1979 = vsub.s32 0, %v1977
    %v1980 = vsel %vm1978, %v1979, %v1977
    %v1981 = vclz %v1980
    %v1982 = vsub.s32 %v1981, 2
    %vm1983 = vcmp.gt.s32.totalorder 0, %v1982
    %v1984 = vsel %vm1983, 0, %v1982
    %v1985 = vsub.s32 32, %v1984
    %v1986 = vshll.u32 %v1977, %v1984
    %v1987 = vshrl.u32 %v1969, %v1985
    %v1988 = vor.u32 %v1986, %v1987
    %v1989 = vsub.s32 4294967266, %v1984
    %v1990 = vadd.s32 %v1989, 127
    %v1991 = vshll.u32 %v1990, 23
    %v1992 = vor.u32 4788187, %v1991
    %v1993 = vand.u32 2147483647, %v1992
    %v1995 = vcvt.s32.f32 %v1988
    %v1996 = vmul.f32 %v1995, %v1993
    %v1997 = vxor.u32 %v1996, 2147483648
    %v1998 = vsel %vm1877, %v1997, %v1996
    %v1999 = vsub.s32 4, %v1975
    %v2000 = vsel %vm1877, %v1999, %v1975
    %v2001 = vsel %vm1876, %v1874, %v1998
    %v2002 = vsel %vm1876, 0, %v2000
    %v2003 = vmul.f32 %v2001, %v2001
    %v2004 = vmul.f32 %v2003, -0.001358992
    %v2005 = vadd.f32 %v2004, 0.041655596
    %v2006 = vmul.f32 %v2003, %v2005
    %v2007 = vadd.f32 %v2006, -0.4999988
    %v2008 = vmul.f32 %v2003, %v2007
    %v2009 = vadd.f32 1.0, %v2008
    %v2010 = vmul.f32 %v2001, %v2001
    %v2011 = vmul.f32 %v2010, -0.00019511016
    %v2012 = vadd.f32 %v2011, 0.008332121
    %v2013 = vmul.f32 %v2010, %v2012
    %v2014 = vadd.f32 %v2013, -0.16666654
    %v2015 = vmul.f32 %v2010, %v2014
    %v2016 = vadd.f32 %v2015, 1.0
    %v2017 = vmul.f32 %v2016, %v2001
    %vm2018 = vweird.f32 %v1874
    %v2019 = vadd.s32 %v2002, 3
    %v2020 = vand.u32 %v2019, 3
    %vm2021 = vcmp.lt.s32.totalorder %v2020, 2
    %vm2022 = vcmp.eq.s32.totalorder %v2020, 0
    %v2023 = vxor.u32 %v2017, 2147483648
    %v2024 = vsel %vm2022, %v2009, %v2023
    %vm2025 = vcmp.eq.s32.totalorder %v2020, 2
    %v2026 = vxor.u32 %v2009, 2147483648
    %v2027 = vsel %vm2025, %v2026, %v2017
    %v2028 = vsel %vm2021, %v2024, %v2027
    %v2029 = vsel %vm2018, nan, %v2028
    %v2030 = vstv %s1869
    %v2031 = vmul.f32 %v2030, %v2029
    %v2032 = vadd.f32 %v1867, %v2031
    %s2033 = sld [smem:[#allocation3 + $0xc]]
    %s2034 = sld [smem:[#allocation3 + $0x8c]]
    %s2035 = sld [smem:[#allocation3 + $0x10c]]
    %v2036 = vstv %s2033
    %v2037 = vmul.f32 %v41, %v2036
    %v2038 = vstv %s2035
    %v2039 = vsub.f32 %v2038, %v2037
    %v2040 = vand.u32 2147483647, %v2039
    %vm2041 = vcmp.le.f32.partialorder %v2040, 0.7853982
    %vm2042 = vcmp.lt.s32.totalorder %v2039, 0
    %v2043 = vand.u32 %v2039, 2139095040
    %v2044 = vshrl.u32 %v2043, 23
    %v2045 = vsub.s32 %v2044, 127
    %v2046 = vand.u32 2147483647, %v2039
    %v2047 = vand.u32 %v2046, 8388607
    %v2048 = vor.u32 %v2047, 8388608
    %v2049 = vsub.s32 0, %v2048
    %v2050 = vadd.s32 %v2045, 1
    %vm2051 = vcmp.gt.s32.totalorder %v2050, 0
    %v2052 = vsel %vm2051, %v2050, 0
    %v2053 = vshrl.u32 %v2052, 5
    %v2054 = vand.u32 %v2052, 31
    %v2055 = vsub.s32 32, %v2054
    %v2056 = vshrl.u32 683565275, %v2055
    %v2057 = vshll.u32 683565275, %v2054
    %v2058 = vshrl.u32 2475754826, %v2055
    %v2059 = vor.u32 %v2057, %v2058
    %v2060 = vshll.u32 2475754826, %v2054
    %v2061 = vshrl.u32 2131351028, %v2055
    %v2062 = vor.u32 %v2060, %v2061
    %v2063 = vshll.u32 2131351028, %v2054
    %v2064 = vshrl.u32 2102212464, %v2055
    %v2065 = vor.u32 %v2063, %v2064
    %v2066 = vshll.u32 2102212464, %v2054
    %v2067 = vshrl.u32 920167782, %v2055
    %v2068 = vor.u32 %v2066, %v2067
    %v2069 = vshll.u32 920167782, %v2054
    %v2070 = vshrl.u32 1326507024, %v2055
    %v2071 = vor.u32 %v2069, %v2070
    %vm2072 = vcmp.lt.s32.totalorder %v2053, 1
    %vm2073 = vcmp.lt.s32.totalorder %v2053, 2
    %vm2074 = vcmp.lt.s32.totalorder %v2053, 3
    %vm2075 = vcmp.lt.s32.totalorder %v2053, 4
    %v2076 = vsel %vm2072, %v2056, %v2059
    %v2077 = vsel %vm2075, %v2065, 2102212464
    %v2078 = vsel %vm2074, %v2062, %v2077
    %v2079 = vsel %vm2073, %v2076, %v2078
    %v2080 = vsel %vm2072, %v2059, %v2062
    %v2081 = vsel %vm2075, %v2068, 920167782
    %v2082 = vsel %vm2074, %v2065, %v2081
    %v2083 = vsel %vm2073, %v2080, %v2082
    %v2084 = vsel %vm2072, %v2062, %v2065
    %v2085 = vsel %vm2075, %v2071, 1326507024
    %v2086 = vsel %vm2074, %v2068, %v2085
    %v2087 = vsel %vm2073, %v2084, %v2086
    %v2088 = vshll.u32 %v2048, 8
    %v2089 = vand.u32 %v2088, 65535
    %v2090 = vshrl.u32 %v2088, 16
    %v2091 = vand.u32 %v2087, 65535
    %v2092 = vshrl.u32 %v2087, 16
    %v2093 = vmul.u32 %v2089, %v2091
    %v2094 = vmul.u32 %v2089, %v2092
    %v2095 = vmul.u32 %v2090, %v2091
    %v2096 = vmul.u32 %v2090, %v2092
    %v2097 = vshll.u32 %v2094, 16
    %v2098 = vshrl.u32 %v2094, 16
    %v2099 = vshll.u32 %v2095, 16
    %v2100 = vshrl.u32 %v2095, 16
    %vm2101 = vc.u32 %v2093, %v2097
    %v2102 = vsel %vm2101, 1, 0
    %v2103 = vadd.s32 %v2093, %v2097
    %v2104 = vadd.s32 %v2096, %v2102
    %vm2105 = vc.u32 %v2103, %v2099
    %v2106 = vsel %vm2105, 1, 0
    %v2107 = vadd.s32 %v2103, %v2099
    %v2108 = vadd.s32 %v2104, %v2106
    %v2109 = vadd.s32 %v2108, %v2098
    %v2110 = vadd.s32 %v2109, %v2100
    %v2111 = vand.u32 %v2088, 65535
    %v2112 = vshrl.u32 %v2088, 16
    %v2113 = vand.u32 %v2083, 65535
    %v2114 = vshrl.u32 %v2083, 16
    %v2115 = vmul.u32 %v2111, %v2113
    %v2116 = vmul.u32 %v2111, %v2114
    %v2117 = vmul.u32 %v2112, %v2113
    %v2118 = vmul.u32 %v2112, %v2114
    %v2119 = vshll.u32 %v2116, 16
    %v2120 = vshrl.u32 %v2116, 16
    %v2121 = vshll.u32 %v2117, 16
    %v2122 = vshrl.u32 %v2117, 16
    %vm2123 = vc.u32 %v2115, %v2119
    %v2124 = vsel %vm2123, 1, 0
    %v2125 = vadd.s32 %v2115, %v2119
    %v2126 = vadd.s32 %v2118, %v2124
    %vm2127 = vc.u32 %v2125, %v2121
    %v2128 = vsel %vm2127, 1, 0
    %v2129 = vadd.s32 %v2125, %v2121
    %v2130 = vadd.s32 %v2126, %v2128
    %v2131 = vadd.s32 %v2130, %v2120
    %v2132 = vadd.s32 %v2131, %v2122
    %v2133 = vmul.u32 %v2088, %v2079
    %v2134 = vadd.s32 %v2110, %v2129
    %vm2135 = vc.u32 %v2110, %v2129
    %v2136 = vadd.s32 %v2132, 1
    %v2137 = vsel %vm2135, %v2136, %v2132
    %v2138 = vadd.s32 %v2133, %v2137
    %v2139 = vadd.s32 %v2138, 536870912
    %v2140 = vshrl.u32 %v2139, 30
    %v2141 = vshll.u32 %v2140, 30
    %v2142 = vsub.s32 %v2138, %v2141
    %vm2143 = vcmp.lt.s32.totalorder %v2142, 0
    %v2144 = vsub.s32 0, %v2142
    %v2145 = vsel %vm2143, %v2144, %v2142
    %v2146 = vclz %v2145
    %v2147 = vsub.s32 %v2146, 2
    %vm2148 = vcmp.gt.s32.totalorder 0, %v2147
    %v2149 = vsel %vm2148, 0, %v2147
    %v2150 = vsub.s32 32, %v2149
    %v2151 = vshll.u32 %v2142, %v2149
    %v2152 = vshrl.u32 %v2134, %v2150
    %v2153 = vor.u32 %v2151, %v2152
    %v2154 = vsub.s32 4294967266, %v2149
    %v2155 = vadd.s32 %v2154, 127
    %v2156 = vshll.u32 %v2155, 23
    %v2157 = vor.u32 4788187, %v2156
    %v2158 = vand.u32 2147483647, %v2157
    %v2160 = vcvt.s32.f32 %v2153
    %v2161 = vmul.f32 %v2160, %v2158
    %v2162 = vxor.u32 %v2161, 2147483648
    %v2163 = vsel %vm2042, %v2162, %v2161
    %v2164 = vsub.s32 4, %v2140
    %v2165 = vsel %vm2042, %v2164, %v2140
    %v2166 = vsel %vm2041, %v2039, %v2163
    %v2167 = vsel %vm2041, 0, %v2165
    %v2168 = vmul.f32 %v2166, %v2166
    %v2169 = vmul.f32 %v2168, -0.001358992
    %v2170 = vadd.f32 %v2169, 0.041655596
    %v2171 = vmul.f32 %v2168, %v2170
    %v2172 = vadd.f32 %v2171, -0.4999988
    %v2173 = vmul.f32 %v2168, %v2172
    %v2174 = vadd.f32 1.0, %v2173
    %v2175 = vmul.f32 %v2166, %v2166
    %v2176 = vmul.f32 %v2175, -0.00019511016
    %v2177 = vadd.f32 %v2176, 0.008332121
    %v2178 = vmul.f32 %v2175, %v2177
    %v2179 = vadd.f32 %v2178, -0.16666654
    %v2180 = vmul.f32 %v2175, %v2179
    %v2181 = vadd.f32 %v2180, 1.0
    %v2182 = vmul.f32 %v2181, %v2166
    %vm2183 = vweird.f32 %v2039
    %v2184 = vadd.s32 %v2167, 3
    %v2185 = vand.u32 %v2184, 3
    %vm2186 = vcmp.lt.s32.totalorder %v2185, 2
    %vm2187 = vcmp.eq.s32.totalorder %v2185, 0
    %v2188 = vxor.u32 %v2182, 2147483648
    %v2189 = vsel %vm2187, %v2174, %v2188
    %vm2190 = vcmp.eq.s32.totalorder %v2185, 2
    %v2191 = vxor.u32 %v2174, 2147483648
    %v2192 = vsel %vm2190, %v2191, %v2182
    %v2193 = vsel %vm2186, %v2189, %v2192
    %v2194 = vsel %vm2183, nan, %v2193
    %v2195 = vstv %s2034
    %v2196 = vmul.f32 %v2195, %v2194
    %v2197 = vadd.f32 %v2032, %v2196
    %s2198 = sld [smem:[#allocation3 + $0xd]]
    %s2199 = sld [smem:[#allocation3 + $0x8d]]
    %s2200 = sld [smem:[#allocation3 + $0x10d]]
    %v2201 = vstv %s2198
    %v2202 = vmul.f32 %v41, %v2201
    %v2203 = vstv %s2200
    %v2204 = vsub.f32 %v2203, %v2202
    %v2205 = vand.u32 2147483647, %v2204
    %vm2206 = vcmp.le.f32.partialorder %v2205, 0.7853982
    %vm2207 = vcmp.lt.s32.totalorder %v2204, 0
    %v2208 = vand.u32 %v2204, 2139095040
    %v2209 = vshrl.u32 %v2208, 23
    %v2210 = vsub.s32 %v2209, 127
    %v2211 = vand.u32 2147483647, %v2204
    %v2212 = vand.u32 %v2211, 8388607
    %v2213 = vor.u32 %v2212, 8388608
    %v2214 = vsub.s32 0, %v2213
    %v2215 = vadd.s32 %v2210, 1
    %vm2216 = vcmp.gt.s32.totalorder %v2215, 0
    %v2217 = vsel %vm2216, %v2215, 0
    %v2218 = vshrl.u32 %v2217, 5
    %v2219 = vand.u32 %v2217, 31
    %v2220 = vsub.s32 32, %v2219
    %v2221 = vshrl.u32 683565275, %v2220
    %v2222 = vshll.u32 683565275, %v2219
    %v2223 = vshrl.u32 2475754826, %v2220
    %v2224 = vor.u32 %v2222, %v2223
    %v2225 = vshll.u32 2475754826, %v2219
    %v2226 = vshrl.u32 2131351028, %v2220
    %v2227 = vor.u32 %v2225, %v2226
    %v2228 = vshll.u32 2131351028, %v2219
    %v2229 = vshrl.u32 2102212464, %v2220
    %v2230 = vor.u32 %v2228, %v2229
    %v2231 = vshll.u32 2102212464, %v2219
    %v2232 = vshrl.u32 920167782, %v2220
    %v2233 = vor.u32 %v2231, %v2232
    %v2234 = vshll.u32 920167782, %v2219
    %v2235 = vshrl.u32 1326507024, %v2220
    %v2236 = vor.u32 %v2234, %v2235
    %vm2237 = vcmp.lt.s32.totalorder %v2218, 1
    %vm2238 = vcmp.lt.s32.totalorder %v2218, 2
    %vm2239 = vcmp.lt.s32.totalorder %v2218, 3
    %vm2240 = vcmp.lt.s32.totalorder %v2218, 4
    %v2241 = vsel %vm2237, %v2221, %v2224
    %v2242 = vsel %vm2240, %v2230, 2102212464
    %v2243 = vsel %vm2239, %v2227, %v2242
    %v2244 = vsel %vm2238, %v2241, %v2243
    %v2245 = vsel %vm2237, %v2224, %v2227
    %v2246 = vsel %vm2240, %v2233, 920167782
    %v2247 = vsel %vm2239, %v2230, %v2246
    %v2248 = vsel %vm2238, %v2245, %v2247
    %v2249 = vsel %vm2237, %v2227, %v2230
    %v2250 = vsel %vm2240, %v2236, 1326507024
    %v2251 = vsel %vm2239, %v2233, %v2250
    %v2252 = vsel %vm2238, %v2249, %v2251
    %v2253 = vshll.u32 %v2213, 8
    %v2254 = vand.u32 %v2253, 65535
    %v2255 = vshrl.u32 %v2253, 16
    %v2256 = vand.u32 %v2252, 65535
    %v2257 = vshrl.u32 %v2252, 16
    %v2258 = vmul.u32 %v2254, %v2256
    %v2259 = vmul.u32 %v2254, %v2257
    %v2260 = vmul.u32 %v2255, %v2256
    %v2261 = vmul.u32 %v2255, %v2257
    %v2262 = vshll.u32 %v2259, 16
    %v2263 = vshrl.u32 %v2259, 16
    %v2264 = vshll.u32 %v2260, 16
    %v2265 = vshrl.u32 %v2260, 16
    %vm2266 = vc.u32 %v2258, %v2262
    %v2267 = vsel %vm2266, 1, 0
    %v2268 = vadd.s32 %v2258, %v2262
    %v2269 = vadd.s32 %v2261, %v2267
    %vm2270 = vc.u32 %v2268, %v2264
    %v2271 = vsel %vm2270, 1, 0
    %v2272 = vadd.s32 %v2268, %v2264
    %v2273 = vadd.s32 %v2269, %v2271
    %v2274 = vadd.s32 %v2273, %v2263
    %v2275 = vadd.s32 %v2274, %v2265
    %v2276 = vand.u32 %v2253, 65535
    %v2277 = vshrl.u32 %v2253, 16
    %v2278 = vand.u32 %v2248, 65535
    %v2279 = vshrl.u32 %v2248, 16
    %v2280 = vmul.u32 %v2276, %v2278
    %v2281 = vmul.u32 %v2276, %v2279
    %v2282 = vmul.u32 %v2277, %v2278
    %v2283 = vmul.u32 %v2277, %v2279
    %v2284 = vshll.u32 %v2281, 16
    %v2285 = vshrl.u32 %v2281, 16
    %v2286 = vshll.u32 %v2282, 16
    %v2287 = vshrl.u32 %v2282, 16
    %vm2288 = vc.u32 %v2280, %v2284
    %v2289 = vsel %vm2288, 1, 0
    %v2290 = vadd.s32 %v2280, %v2284
    %v2291 = vadd.s32 %v2283, %v2289
    %vm2292 = vc.u32 %v2290, %v2286
    %v2293 = vsel %vm2292, 1, 0
    %v2294 = vadd.s32 %v2290, %v2286
    %v2295 = vadd.s32 %v2291, %v2293
    %v2296 = vadd.s32 %v2295, %v2285
    %v2297 = vadd.s32 %v2296, %v2287
    %v2298 = vmul.u32 %v2253, %v2244
    %v2299 = vadd.s32 %v2275, %v2294
    %vm2300 = vc.u32 %v2275, %v2294
    %v2301 = vadd.s32 %v2297, 1
    %v2302 = vsel %vm2300, %v2301, %v2297
    %v2303 = vadd.s32 %v2298, %v2302
    %v2304 = vadd.s32 %v2303, 536870912
    %v2305 = vshrl.u32 %v2304, 30
    %v2306 = vshll.u32 %v2305, 30
    %v2307 = vsub.s32 %v2303, %v2306
    %vm2308 = vcmp.lt.s32.totalorder %v2307, 0
    %v2309 = vsub.s32 0, %v2307
    %v2310 = vsel %vm2308, %v2309, %v2307
    %v2311 = vclz %v2310
    %v2312 = vsub.s32 %v2311, 2
    %vm2313 = vcmp.gt.s32.totalorder 0, %v2312
    %v2314 = vsel %vm2313, 0, %v2312
    %v2315 = vsub.s32 32, %v2314
    %v2316 = vshll.u32 %v2307, %v2314
    %v2317 = vshrl.u32 %v2299, %v2315
    %v2318 = vor.u32 %v2316, %v2317
    %v2319 = vsub.s32 4294967266, %v2314
    %v2320 = vadd.s32 %v2319, 127
    %v2321 = vshll.u32 %v2320, 23
    %v2322 = vor.u32 4788187, %v2321
    %v2323 = vand.u32 2147483647, %v2322
    %v2325 = vcvt.s32.f32 %v2318
    %v2326 = vmul.f32 %v2325, %v2323
    %v2327 = vxor.u32 %v2326, 2147483648
    %v2328 = vsel %vm2207, %v2327, %v2326
    %v2329 = vsub.s32 4, %v2305
    %v2330 = vsel %vm2207, %v2329, %v2305
    %v2331 = vsel %vm2206, %v2204, %v2328
    %v2332 = vsel %vm2206, 0, %v2330
    %v2333 = vmul.f32 %v2331, %v2331
    %v2334 = vmul.f32 %v2333, -0.001358992
    %v2335 = vadd.f32 %v2334, 0.041655596
    %v2336 = vmul.f32 %v2333, %v2335
    %v2337 = vadd.f32 %v2336, -0.4999988
    %v2338 = vmul.f32 %v2333, %v2337
    %v2339 = vadd.f32 1.0, %v2338
    %v2340 = vmul.f32 %v2331, %v2331
    %v2341 = vmul.f32 %v2340, -0.00019511016
    %v2342 = vadd.f32 %v2341, 0.008332121
    %v2343 = vmul.f32 %v2340, %v2342
    %v2344 = vadd.f32 %v2343, -0.16666654
    %v2345 = vmul.f32 %v2340, %v2344
    %v2346 = vadd.f32 %v2345, 1.0
    %v2347 = vmul.f32 %v2346, %v2331
    %vm2348 = vweird.f32 %v2204
    %v2349 = vadd.s32 %v2332, 3
    %v2350 = vand.u32 %v2349, 3
    %vm2351 = vcmp.lt.s32.totalorder %v2350, 2
    %vm2352 = vcmp.eq.s32.totalorder %v2350, 0
    %v2353 = vxor.u32 %v2347, 2147483648
    %v2354 = vsel %vm2352, %v2339, %v2353
    %vm2355 = vcmp.eq.s32.totalorder %v2350, 2
    %v2356 = vxor.u32 %v2339, 2147483648
    %v2357 = vsel %vm2355, %v2356, %v2347
    %v2358 = vsel %vm2351, %v2354, %v2357
    %v2359 = vsel %vm2348, nan, %v2358
    %v2360 = vstv %s2199
    %v2361 = vmul.f32 %v2360, %v2359
    %v2362 = vadd.f32 %v2197, %v2361
    %s2363 = sld [smem:[#allocation3 + $0xe]]
    %s2364 = sld [smem:[#allocation3 + $0x8e]]
    %s2365 = sld [smem:[#allocation3 + $0x10e]]
    %v2366 = vstv %s2363
    %v2367 = vmul.f32 %v41, %v2366
    %v2368 = vstv %s2365
    %v2369 = vsub.f32 %v2368, %v2367
    %v2370 = vand.u32 2147483647, %v2369
    %vm2371 = vcmp.le.f32.partialorder %v2370, 0.7853982
    %vm2372 = vcmp.lt.s32.totalorder %v2369, 0
    %v2373 = vand.u32 %v2369, 2139095040
    %v2374 = vshrl.u32 %v2373, 23
    %v2375 = vsub.s32 %v2374, 127
    %v2376 = vand.u32 2147483647, %v2369
    %v2377 = vand.u32 %v2376, 8388607
    %v2378 = vor.u32 %v2377, 8388608
    %v2379 = vsub.s32 0, %v2378
    %v2380 = vadd.s32 %v2375, 1
    %vm2381 = vcmp.gt.s32.totalorder %v2380, 0
    %v2382 = vsel %vm2381, %v2380, 0
    %v2383 = vshrl.u32 %v2382, 5
    %v2384 = vand.u32 %v2382, 31
    %v2385 = vsub.s32 32, %v2384
    %v2386 = vshrl.u32 683565275, %v2385
    %v2387 = vshll.u32 683565275, %v2384
    %v2388 = vshrl.u32 2475754826, %v2385
    %v2389 = vor.u32 %v2387, %v2388
    %v2390 = vshll.u32 2475754826, %v2384
    %v2391 = vshrl.u32 2131351028, %v2385
    %v2392 = vor.u32 %v2390, %v2391
    %v2393 = vshll.u32 2131351028, %v2384
    %v2394 = vshrl.u32 2102212464, %v2385
    %v2395 = vor.u32 %v2393, %v2394
    %v2396 = vshll.u32 2102212464, %v2384
    %v2397 = vshrl.u32 920167782, %v2385
    %v2398 = vor.u32 %v2396, %v2397
    %v2399 = vshll.u32 920167782, %v2384
    %v2400 = vshrl.u32 1326507024, %v2385
    %v2401 = vor.u32 %v2399, %v2400
    %vm2402 = vcmp.lt.s32.totalorder %v2383, 1
    %vm2403 = vcmp.lt.s32.totalorder %v2383, 2
    %vm2404 = vcmp.lt.s32.totalorder %v2383, 3
    %vm2405 = vcmp.lt.s32.totalorder %v2383, 4
    %v2406 = vsel %vm2402, %v2386, %v2389
    %v2407 = vsel %vm2405, %v2395, 2102212464
    %v2408 = vsel %vm2404, %v2392, %v2407
    %v2409 = vsel %vm2403, %v2406, %v2408
    %v2410 = vsel %vm2402, %v2389, %v2392
    %v2411 = vsel %vm2405, %v2398, 920167782
    %v2412 = vsel %vm2404, %v2395, %v2411
    %v2413 = vsel %vm2403, %v2410, %v2412
    %v2414 = vsel %vm2402, %v2392, %v2395
    %v2415 = vsel %vm2405, %v2401, 1326507024
    %v2416 = vsel %vm2404, %v2398, %v2415
    %v2417 = vsel %vm2403, %v2414, %v2416
    %v2418 = vshll.u32 %v2378, 8
    %v2419 = vand.u32 %v2418, 65535
    %v2420 = vshrl.u32 %v2418, 16
    %v2421 = vand.u32 %v2417, 65535
    %v2422 = vshrl.u32 %v2417, 16
    %v2423 = vmul.u32 %v2419, %v2421
    %v2424 = vmul.u32 %v2419, %v2422
    %v2425 = vmul.u32 %v2420, %v2421
    %v2426 = vmul.u32 %v2420, %v2422
    %v2427 = vshll.u32 %v2424, 16
    %v2428 = vshrl.u32 %v2424, 16
    %v2429 = vshll.u32 %v2425, 16
    %v2430 = vshrl.u32 %v2425, 16
    %vm2431 = vc.u32 %v2423, %v2427
    %v2432 = vsel %vm2431, 1, 0
    %v2433 = vadd.s32 %v2423, %v2427
    %v2434 = vadd.s32 %v2426, %v2432
    %vm2435 = vc.u32 %v2433, %v2429
    %v2436 = vsel %vm2435, 1, 0
    %v2437 = vadd.s32 %v2433, %v2429
    %v2438 = vadd.s32 %v2434, %v2436
    %v2439 = vadd.s32 %v2438, %v2428
    %v2440 = vadd.s32 %v2439, %v2430
    %v2441 = vand.u32 %v2418, 65535
    %v2442 = vshrl.u32 %v2418, 16
    %v2443 = vand.u32 %v2413, 65535
    %v2444 = vshrl.u32 %v2413, 16
    %v2445 = vmul.u32 %v2441, %v2443
    %v2446 = vmul.u32 %v2441, %v2444
    %v2447 = vmul.u32 %v2442, %v2443
    %v2448 = vmul.u32 %v2442, %v2444
    %v2449 = vshll.u32 %v2446, 16
    %v2450 = vshrl.u32 %v2446, 16
    %v2451 = vshll.u32 %v2447, 16
    %v2452 = vshrl.u32 %v2447, 16
    %vm2453 = vc.u32 %v2445, %v2449
    %v2454 = vsel %vm2453, 1, 0
    %v2455 = vadd.s32 %v2445, %v2449
    %v2456 = vadd.s32 %v2448, %v2454
    %vm2457 = vc.u32 %v2455, %v2451
    %v2458 = vsel %vm2457, 1, 0
    %v2459 = vadd.s32 %v2455, %v2451
    %v2460 = vadd.s32 %v2456, %v2458
    %v2461 = vadd.s32 %v2460, %v2450
    %v2462 = vadd.s32 %v2461, %v2452
    %v2463 = vmul.u32 %v2418, %v2409
    %v2464 = vadd.s32 %v2440, %v2459
    %vm2465 = vc.u32 %v2440, %v2459
    %v2466 = vadd.s32 %v2462, 1
    %v2467 = vsel %vm2465, %v2466, %v2462
    %v2468 = vadd.s32 %v2463, %v2467
    %v2469 = vadd.s32 %v2468, 536870912
    %v2470 = vshrl.u32 %v2469, 30
    %v2471 = vshll.u32 %v2470, 30
    %v2472 = vsub.s32 %v2468, %v2471
    %vm2473 = vcmp.lt.s32.totalorder %v2472, 0
    %v2474 = vsub.s32 0, %v2472
    %v2475 = vsel %vm2473, %v2474, %v2472
    %v2476 = vclz %v2475
    %v2477 = vsub.s32 %v2476, 2
    %vm2478 = vcmp.gt.s32.totalorder 0, %v2477
    %v2479 = vsel %vm2478, 0, %v2477
    %v2480 = vsub.s32 32, %v2479
    %v2481 = vshll.u32 %v2472, %v2479
    %v2482 = vshrl.u32 %v2464, %v2480
    %v2483 = vor.u32 %v2481, %v2482
    %v2484 = vsub.s32 4294967266, %v2479
    %v2485 = vadd.s32 %v2484, 127
    %v2486 = vshll.u32 %v2485, 23
    %v2487 = vor.u32 4788187, %v2486
    %v2488 = vand.u32 2147483647, %v2487
    %v2490 = vcvt.s32.f32 %v2483
    %v2491 = vmul.f32 %v2490, %v2488
    %v2492 = vxor.u32 %v2491, 2147483648
    %v2493 = vsel %vm2372, %v2492, %v2491
    %v2494 = vsub.s32 4, %v2470
    %v2495 = vsel %vm2372, %v2494, %v2470
    %v2496 = vsel %vm2371, %v2369, %v2493
    %v2497 = vsel %vm2371, 0, %v2495
    %v2498 = vmul.f32 %v2496, %v2496
    %v2499 = vmul.f32 %v2498, -0.001358992
    %v2500 = vadd.f32 %v2499, 0.041655596
    %v2501 = vmul.f32 %v2498, %v2500
    %v2502 = vadd.f32 %v2501, -0.4999988
    %v2503 = vmul.f32 %v2498, %v2502
    %v2504 = vadd.f32 1.0, %v2503
    %v2505 = vmul.f32 %v2496, %v2496
    %v2506 = vmul.f32 %v2505, -0.00019511016
    %v2507 = vadd.f32 %v2506, 0.008332121
    %v2508 = vmul.f32 %v2505, %v2507
    %v2509 = vadd.f32 %v2508, -0.16666654
    %v2510 = vmul.f32 %v2505, %v2509
    %v2511 = vadd.f32 %v2510, 1.0
    %v2512 = vmul.f32 %v2511, %v2496
    %vm2513 = vweird.f32 %v2369
    %v2514 = vadd.s32 %v2497, 3
    %v2515 = vand.u32 %v2514, 3
    %vm2516 = vcmp.lt.s32.totalorder %v2515, 2
    %vm2517 = vcmp.eq.s32.totalorder %v2515, 0
    %v2518 = vxor.u32 %v2512, 2147483648
    %v2519 = vsel %vm2517, %v2504, %v2518
    %vm2520 = vcmp.eq.s32.totalorder %v2515, 2
    %v2521 = vxor.u32 %v2504, 2147483648
    %v2522 = vsel %vm2520, %v2521, %v2512
    %v2523 = vsel %vm2516, %v2519, %v2522
    %v2524 = vsel %vm2513, nan, %v2523
    %v2525 = vstv %s2364
    %v2526 = vmul.f32 %v2525, %v2524
    %v2527 = vadd.f32 %v2362, %v2526
    %s2528 = sld [smem:[#allocation3 + $0xf]]
    %s2529 = sld [smem:[#allocation3 + $0x8f]]
    %s2530 = sld [smem:[#allocation3 + $0x10f]]
    %v2531 = vstv %s2528
    %v2532 = vmul.f32 %v41, %v2531
    %v2533 = vstv %s2530
    %v2534 = vsub.f32 %v2533, %v2532
    %v2535 = vand.u32 2147483647, %v2534
    %vm2536 = vcmp.le.f32.partialorder %v2535, 0.7853982
    %vm2537 = vcmp.lt.s32.totalorder %v2534, 0
    %v2538 = vand.u32 %v2534, 2139095040
    %v2539 = vshrl.u32 %v2538, 23
    %v2540 = vsub.s32 %v2539, 127
    %v2541 = vand.u32 2147483647, %v2534
    %v2542 = vand.u32 %v2541, 8388607
    %v2543 = vor.u32 %v2542, 8388608
    %v2544 = vsub.s32 0, %v2543
    %v2545 = vadd.s32 %v2540, 1
    %vm2546 = vcmp.gt.s32.totalorder %v2545, 0
    %v2547 = vsel %vm2546, %v2545, 0
    %v2548 = vshrl.u32 %v2547, 5
    %v2549 = vand.u32 %v2547, 31
    %v2550 = vsub.s32 32, %v2549
    %v2551 = vshrl.u32 683565275, %v2550
    %v2552 = vshll.u32 683565275, %v2549
    %v2553 = vshrl.u32 2475754826, %v2550
    %v2554 = vor.u32 %v2552, %v2553
    %v2555 = vshll.u32 2475754826, %v2549
    %v2556 = vshrl.u32 2131351028, %v2550
    %v2557 = vor.u32 %v2555, %v2556
    %v2558 = vshll.u32 2131351028, %v2549
    %v2559 = vshrl.u32 2102212464, %v2550
    %v2560 = vor.u32 %v2558, %v2559
    %v2561 = vshll.u32 2102212464, %v2549
    %v2562 = vshrl.u32 920167782, %v2550
    %v2563 = vor.u32 %v2561, %v2562
    %v2564 = vshll.u32 920167782, %v2549
    %v2565 = vshrl.u32 1326507024, %v2550
    %v2566 = vor.u32 %v2564, %v2565
    %vm2567 = vcmp.lt.s32.totalorder %v2548, 1
    %vm2568 = vcmp.lt.s32.totalorder %v2548, 2
    %vm2569 = vcmp.lt.s32.totalorder %v2548, 3
    %vm2570 = vcmp.lt.s32.totalorder %v2548, 4
    %v2571 = vsel %vm2567, %v2551, %v2554
    %v2572 = vsel %vm2570, %v2560, 2102212464
    %v2573 = vsel %vm2569, %v2557, %v2572
    %v2574 = vsel %vm2568, %v2571, %v2573
    %v2575 = vsel %vm2567, %v2554, %v2557
    %v2576 = vsel %vm2570, %v2563, 920167782
    %v2577 = vsel %vm2569, %v2560, %v2576
    %v2578 = vsel %vm2568, %v2575, %v2577
    %v2579 = vsel %vm2567, %v2557, %v2560
    %v2580 = vsel %vm2570, %v2566, 1326507024
    %v2581 = vsel %vm2569, %v2563, %v2580
    %v2582 = vsel %vm2568, %v2579, %v2581
    %v2583 = vshll.u32 %v2543, 8
    %v2584 = vand.u32 %v2583, 65535
    %v2585 = vshrl.u32 %v2583, 16
    %v2586 = vand.u32 %v2582, 65535
    %v2587 = vshrl.u32 %v2582, 16
    %v2588 = vmul.u32 %v2584, %v2586
    %v2589 = vmul.u32 %v2584, %v2587
    %v2590 = vmul.u32 %v2585, %v2586
    %v2591 = vmul.u32 %v2585, %v2587
    %v2592 = vshll.u32 %v2589, 16
    %v2593 = vshrl.u32 %v2589, 16
    %v2594 = vshll.u32 %v2590, 16
    %v2595 = vshrl.u32 %v2590, 16
    %vm2596 = vc.u32 %v2588, %v2592
    %v2597 = vsel %vm2596, 1, 0
    %v2598 = vadd.s32 %v2588, %v2592
    %v2599 = vadd.s32 %v2591, %v2597
    %vm2600 = vc.u32 %v2598, %v2594
    %v2601 = vsel %vm2600, 1, 0
    %v2602 = vadd.s32 %v2598, %v2594
    %v2603 = vadd.s32 %v2599, %v2601
    %v2604 = vadd.s32 %v2603, %v2593
    %v2605 = vadd.s32 %v2604, %v2595
    %v2606 = vand.u32 %v2583, 65535
    %v2607 = vshrl.u32 %v2583, 16
    %v2608 = vand.u32 %v2578, 65535
    %v2609 = vshrl.u32 %v2578, 16
    %v2610 = vmul.u32 %v2606, %v2608
    %v2611 = vmul.u32 %v2606, %v2609
    %v2612 = vmul.u32 %v2607, %v2608
    %v2613 = vmul.u32 %v2607, %v2609
    %v2614 = vshll.u32 %v2611, 16
    %v2615 = vshrl.u32 %v2611, 16
    %v2616 = vshll.u32 %v2612, 16
    %v2617 = vshrl.u32 %v2612, 16
    %vm2618 = vc.u32 %v2610, %v2614
    %v2619 = vsel %vm2618, 1, 0
    %v2620 = vadd.s32 %v2610, %v2614
    %v2621 = vadd.s32 %v2613, %v2619
    %vm2622 = vc.u32 %v2620, %v2616
    %v2623 = vsel %vm2622, 1, 0
    %v2624 = vadd.s32 %v2620, %v2616
    %v2625 = vadd.s32 %v2621, %v2623
    %v2626 = vadd.s32 %v2625, %v2615
    %v2627 = vadd.s32 %v2626, %v2617
    %v2628 = vmul.u32 %v2583, %v2574
    %v2629 = vadd.s32 %v2605, %v2624
    %vm2630 = vc.u32 %v2605, %v2624
    %v2631 = vadd.s32 %v2627, 1
    %v2632 = vsel %vm2630, %v2631, %v2627
    %v2633 = vadd.s32 %v2628, %v2632
    %v2634 = vadd.s32 %v2633, 536870912
    %v2635 = vshrl.u32 %v2634, 30
    %v2636 = vshll.u32 %v2635, 30
    %v2637 = vsub.s32 %v2633, %v2636
    %vm2638 = vcmp.lt.s32.totalorder %v2637, 0
    %v2639 = vsub.s32 0, %v2637
    %v2640 = vsel %vm2638, %v2639, %v2637
    %v2641 = vclz %v2640
    %v2642 = vsub.s32 %v2641, 2
    %vm2643 = vcmp.gt.s32.totalorder 0, %v2642
    %v2644 = vsel %vm2643, 0, %v2642
    %v2645 = vsub.s32 32, %v2644
    %v2646 = vshll.u32 %v2637, %v2644
    %v2647 = vshrl.u32 %v2629, %v2645
    %v2648 = vor.u32 %v2646, %v2647
    %v2649 = vsub.s32 4294967266, %v2644
    %v2650 = vadd.s32 %v2649, 127
    %v2651 = vshll.u32 %v2650, 23
    %v2652 = vor.u32 4788187, %v2651
    %v2653 = vand.u32 2147483647, %v2652
    %v2655 = vcvt.s32.f32 %v2648
    %v2656 = vmul.f32 %v2655, %v2653
    %v2657 = vxor.u32 %v2656, 2147483648
    %v2658 = vsel %vm2537, %v2657, %v2656
    %v2659 = vsub.s32 4, %v2635
    %v2660 = vsel %vm2537, %v2659, %v2635
    %v2661 = vsel %vm2536, %v2534, %v2658
    %v2662 = vsel %vm2536, 0, %v2660
    %v2663 = vmul.f32 %v2661, %v2661
    %v2664 = vmul.f32 %v2663, -0.001358992
    %v2665 = vadd.f32 %v2664, 0.041655596
    %v2666 = vmul.f32 %v2663, %v2665
    %v2667 = vadd.f32 %v2666, -0.4999988
    %v2668 = vmul.f32 %v2663, %v2667
    %v2669 = vadd.f32 1.0, %v2668
    %v2670 = vmul.f32 %v2661, %v2661
    %v2671 = vmul.f32 %v2670, -0.00019511016
    %v2672 = vadd.f32 %v2671, 0.008332121
    %v2673 = vmul.f32 %v2670, %v2672
    %v2674 = vadd.f32 %v2673, -0.16666654
    %v2675 = vmul.f32 %v2670, %v2674
    %v2676 = vadd.f32 %v2675, 1.0
    %v2677 = vmul.f32 %v2676, %v2661
    %vm2678 = vweird.f32 %v2534
    %v2679 = vadd.s32 %v2662, 3
    %v2680 = vand.u32 %v2679, 3
    %vm2681 = vcmp.lt.s32.totalorder %v2680, 2
    %vm2682 = vcmp.eq.s32.totalorder %v2680, 0
    %v2683 = vxor.u32 %v2677, 2147483648
    %v2684 = vsel %vm2682, %v2669, %v2683
    %vm2685 = vcmp.eq.s32.totalorder %v2680, 2
    %v2686 = vxor.u32 %v2669, 2147483648
    %v2687 = vsel %vm2685, %v2686, %v2677
    %v2688 = vsel %vm2681, %v2684, %v2687
    %v2689 = vsel %vm2678, nan, %v2688
    %v2690 = vstv %s2529
    %v2691 = vmul.f32 %v2690, %v2689
    %v2692 = vadd.f32 %v2527, %v2691
    %vm2693 = vcmp.gt.f32.partialorder %v2692, 0.0
    %v2694 = vmul.f32 %v2692, 0.05
    %v2695 = vsel %vm2693, %v2692, %v2694
    %v2696 = vld [vmem:[#allocation4] sm:$0xff]
    %vm2697 = vcmp.gt.f32.partialorder %v2696, 0.0
    %v2698 = vsel %vm2697, %v2695, -9e+15
    %vm2699 = vcmask 64512
    %2700 = vst.msk [vmem:[#allocation7] sm:$0xff] %vm2699, %v2698
    // Predicated region
    $region22: #{tpu_custom_call.1} parent=1 // pred_check
      _
    $region23: #{tpu_custom_call.1} parent=1 // pred_check_branch
      %2702 = sbr.rel (0) target = $region25
    $region24: #{tpu_custom_call.1} parent=1 // pred_region
      %2704 = vsyncadd [#allocation6], 0
      %s2706 = sshll.u32 [#allocation7], 4
      %s2707 = int_to_ptr.vmem [resolvable:$true] %s2706
      %s2708 = sshll.u32 %s5, 4
      %s2709 = int_to_ptr.hbm [resolvable:$true] %s2708
      %2711 = dma.vmem_to_hbm [thread:$0]  %s2707, 128, %s2709, [#allocation6]
    $region25: #{tpu_custom_call.1} parent=1 // pred_fallthru
      _
    // Predicated region
    $region26: #{tpu_custom_call.1} parent=1 // pred_check
      _
    $region27: #{tpu_custom_call.1} parent=1 // pred_check_branch
      %2713 = sbr.rel (0) target = $region29
    $region28: #{tpu_custom_call.1} parent=1 // pred_region
      %2715 = dma.done [#allocation6], 128
    $region29: #{tpu_custom_call.1} parent=1 // pred_fallthru
      _
    %2716 = vsyncpa [#allocation5], 1
    %2717 = vsyncpa [#allocation6], 1

</llo_original>
